<compile_context>
chip_gen: v5e
topology: v5e:2x2
jax: 0.10.0
libtpu: 0.0.40
codegen_flags: <defaults>
</compile_context>

<pallas_src>
import functools

import jax
import jax.numpy as jnp
from jax.experimental import pallas as pl
from jax.experimental.pallas import tpu as pltpu

EPS = 1e-5       # PyTorch BatchNorm default eps; train-mode (batch) statistics.
STRIDE = 128     # lanes per batch element: 121 conv1 positions + 7 zero pads.


# --------------------------------------------------------------------------- #
# In-kernel helpers
# --------------------------------------------------------------------------- #
def _shift_cols(x, k):
    """x[:, i] <- x[:, i + k] (cyclic lane rotation on the XLU).

    Wrapped / cross-batch lanes are never among the valid output positions:
    every valid read stays inside its own 128-lane batch block (offset <= 120).
    """
    if k == 0:
        return x
    return pltpu.roll(x, x.shape[-1] - k, axis=1)


def _bn_relu(y, gamma, beta, n, mask=None):
    """Train-mode BatchNorm (biased variance, eps=1e-5) + ReLU, one pass, f32.

    `mask` (1, ncols) selects the lanes belonging to the BN population; for
    conv1 it is omitted because the pad lanes are exactly zero (zero patches,
    no conv bias) and thus never perturb the sums -- only the divisor matters.
    """
    ym = y if mask is None else y * mask
    inv_n = 1.0 / float(n)
    mean = jnp.sum(ym, axis=1, keepdims=True) * inv_n
    var = jnp.sum(ym * y, axis=1, keepdims=True) * inv_n - mean * mean
    scale = gamma * jax.lax.rsqrt(jnp.maximum(var, 0.0) + EPS)
    shift = beta - mean * scale
    return jnp.maximum(y * scale + shift, 0.0)


# --------------------------------------------------------------------------- #
# Fused kernel
# --------------------------------------------------------------------------- #
def _fused_actor_kernel(p1_ref, w1_ref, g1_ref, be1_ref,
                        w2_ref, g2_ref, be2_ref,
                        wl1_ref, bl1_ref, wl2_ref, bl2_ref,
                        out_ref, *, batch):
    ncols = batch * STRIDE

    # ---- conv1 (1->8, k=4, s=2) as one MXU matmul on the patch matrix. ------
    # Layout: 8 out-channels on sublanes, (batch, 11x11 [+7 pad]) on lanes;
    # column index = b*128 + h*11 + w.
    y1 = jnp.dot(w1_ref[...], p1_ref[...], preferred_element_type=jnp.float32)
    # BatchNorm2d(8) + ReLU over the 121*batch valid positions.
    y1 = _bn_relu(y1, g1_ref[...], be1_ref[...], 121 * batch)        # (8, ncols)

    # ---- MaxPool2d(2): max over lane offsets {0, 1, 11, 12}. ----------------
    pool1 = jnp.maximum(jnp.maximum(y1, _shift_cols(y1, 1)),
                        jnp.maximum(_shift_cols(y1, 11), _shift_cols(y1, 12)))
    # Valid pooled values now live at lane offset 22*i + 2*j (i, j in [0,5)).

    # ---- conv2 (8->32, k=3, s=1): 9 tap-accumulated (32,8) matmuls. ---------
    y2 = None
    for ki in range(3):
        for kj in range(3):
            part = jnp.dot(w2_ref[3 * ki + kj],
                           _shift_cols(pool1, 22 * ki + 2 * kj),
                           preferred_element_type=jnp.float32)
            y2 = part if y2 is None else y2 + part                   # (32, ncols)

    # BatchNorm2d(32) + ReLU: statistics only over the 9 valid conv2 output
    # positions per batch element (lane offsets {0,2,4,22,24,26,44,46,48}).
    lane = jax.lax.broadcasted_iota(jnp.int32, (1, ncols), 1)
    pos = jnp.bitwise_and(lane, STRIDE - 1)
    mask2 = functools.reduce(
        jnp.logical_or,
        [pos == (22 * oi + 2 * oj) for oi in range(3) for oj in range(3)],
    ).astype(jnp.float32)
    y2 = _bn_relu(y2, g2_ref[...], be2_ref[...], 9 * batch, mask=mask2)

    # ---- MaxPool2d(k=2, s=1): max over lane offsets {0, 2, 22, 24}. ---------
    pool2 = jnp.maximum(jnp.maximum(y2, _shift_cols(y2, 2)),
                        jnp.maximum(_shift_cols(y2, 22), _shift_cols(y2, 24)))

    # ---- Linear(128, 64): 4 tap-accumulated (64,32) matmuls.  The torch NCHW
    # flatten order (feature = channel*4 + pool_pos) is baked into the packed
    # weight, so no concatenate / relayout is needed. --------------------------
    h = None
    for p in range(2):
        for q in range(2):
            part = jnp.dot(wl1_ref[2 * p + q],
                           _shift_cols(pool2, 22 * p + 2 * q),
                           preferred_element_type=jnp.float32)
            h = part if h is None else h + part                      # (64, ncols)

    # Compact to one column per batch element (valid column = b*128) with a
    # tiny iota-built one-hot (no HBM traffic); everything downstream is
    # (., batch) only.
    rows = jax.lax.broadcasted_iota(jnp.int32, (ncols, batch), 0)
    cols = jax.lax.broadcasted_iota(jnp.int32, (ncols, batch), 1)
    sel = (rows == cols * STRIDE).astype(jnp.float32)
    h = jnp.dot(h, sel, preferred_element_type=jnp.float32) + bl1_ref[...]
    h = jnp.maximum(h, 0.0)                                          # (64, batch)

    # ---- Linear(64, A) + softmax over actions (sublane reduction). ----------
    logits = jnp.dot(wl2_ref[...], h,
                     preferred_element_type=jnp.float32) + bl2_ref[...]
    m = jnp.max(logits, axis=0, keepdims=True)
    e = jnp.exp(logits - m)
    denom = jnp.sum(e, axis=0, keepdims=True)
    # Approximate reciprocal uses the otherwise idle EUP slot (probabilities
    # sum to 1 to ~1e-4; set approx=False for exact torch-softmax parity).
    out_ref[...] = e * pl.reciprocal(denom, approx=True)


# --------------------------------------------------------------------------- #
# Host-side (jitted) glue
# --------------------------------------------------------------------------- #
def _conv1_patches(x_img):
    """im2col for conv1 (k=4, s=2): (B, 25, 25) -> (16, B*128).

    Row = ki*4 + kj (matches the packed conv1 weight); column = b*128 + h*11 + w
    for the 121 output positions, followed by 7 zero pad lanes per batch so the
    per-batch lane stride is 128 (keeps every in-kernel roll/matmul lane
    aligned).  The stride-2 window gather itself has no clean in-kernel vector
    equivalent, so it stays in the jitted wrapper as one fused XLA producer.
    """
    batch = x_img.shape[0]
    taps = [x_img[:, ki:ki + 21:2, kj:kj + 21:2].reshape(batch, 121)
            for ki in range(4) for kj in range(4)]
    p = jnp.stack(taps, axis=0)                          # (16, B, 121)
    p = jnp.pad(p, ((0, 0), (0, 0), (0, STRIDE - 121)))  # (16, B, 128)
    return p.reshape(16, batch * STRIDE)


@jax.jit
def cnn_actor_forward(params, x):
    """action_prob = CNN_Actor(x); x: (B, 625) flattened 25x25 observations."""
    batch = x.shape[0]
    x_img = x.reshape(batch, 25, 25).astype(jnp.float32)
    p1 = _conv1_patches(x_img)                           # (16, batch*128)
    n_act = params['w_l2'].shape[0]

    # Gridless single-block kernel: the working set is O(batch) and ~1 MiB at
    # batch=2, far below VMEM on v5e/v6e/v7x.  If batch grows large, add a grid
    # over the lane (batch) axis with dimension_semantics=("parallel",) so a
    # v7x chip's two TensorCores split the work -- note BatchNorm uses batch
    # statistics, so that also needs a cross-core partial-sum exchange.
    probs_t = pl.pallas_call(
        functools.partial(_fused_actor_kernel, batch=batch),
        out_shape=jax.ShapeDtypeStruct((n_act, batch), jnp.float32),
        in_specs=[pl.BlockSpec(memory_space=pltpu.MemorySpace.VMEM)] * 11,
        out_specs=pl.BlockSpec(memory_space=pltpu.MemorySpace.VMEM),
    )(p1,
      params['w1'], params['g1'], params['be1'],
      params['w2'], params['g2'], params['be2'],
      params['w_l1'], params['b_l1'], params['w_l2'], params['b_l2'])

    # Kernel computes (action, batch) so softmax is a cheap sublane reduction;
    # transpose back to the torch (batch, action) layout.
    # NOTE: the torch forward's trailing `x = x.squeeze(0)` is dead code
    # (its result is unused); only action_prob is returned here as well.
    return probs_t.T


# --------------------------------------------------------------------------- #
# Parameters (torch layouts) and packing into kernel layouts
# --------------------------------------------------------------------------- #
def init_torch_params(key, action_space):
    """Parameters in the PyTorch module's native shapes (uniform +-1/sqrt(fan_in))."""
    ks = jax.random.split(key, 8)

    def u(k, shape, fan_in):
        bound = 1.0 / (fan_in ** 0.5)
        return jax.random.uniform(k, shape, jnp.float32, -bound, bound)

    return {
        'conv1_w': u(ks[0], (8, 1, 4, 4), 16), 'conv1_b': u(ks[1], (8,), 16),
        'bn1_g': jnp.ones((8,), jnp.float32), 'bn1_b': jnp.zeros((8,), jnp.float32),
        'conv2_w': u(ks[2], (32, 8, 3, 3), 72), 'conv2_b': u(ks[3], (32,), 72),
        'bn2_g': jnp.ones((32,), jnp.float32), 'bn2_b': jnp.zeros((32,), jnp.float32),
        'l1_w': u(ks[4], (64, 128), 128), 'l1_b': u(ks[5], (64,), 128),
        'l2_w': u(ks[6], (action_space, 64), 64), 'l2_b': u(ks[7], (action_space,), 64),
    }


def pack_params(tp):
    """Repack torch-layout parameters into the kernel's matmul layouts.

    Conv biases are intentionally NOT packed: a per-channel constant added
    before train-mode BatchNorm cancels exactly in the mean subtraction.
    """
    n_act = tp['l2_w'].shape[0]
    return {
        # conv1 weight (8,1,4,4) -> (8, 16), column = ki*4 + kj
        'w1': tp['conv1_w'].reshape(8, 16),
        'g1': tp['bn1_g'].reshape(8, 1), 'be1': tp['bn1_b'].reshape(8, 1),
        # conv2 weight (32,8,3,3) -> (9, 32, 8), leading index = ki*3 + kj
        'w2': jnp.transpose(tp['conv2_w'], (2, 3, 0, 1)).reshape(9, 32, 8),
        'g2': tp['bn2_g'].reshape(32, 1), 'be2': tp['bn2_b'].reshape(32, 1),
        # linear1 weight (64,128), torch feature index c*4 + s
        #   -> (4, 64, 32) with [s, o, c] = W[o, c*4 + s]
        'w_l1': tp['l1_w'].reshape(64, 32, 4).transpose(2, 0, 1),
        'b_l1': tp['l1_b'].reshape(64, 1),
        'w_l2': tp['l2_w'],                               # (A, 64)
        'b_l2': tp['l2_b'].reshape(n_act, 1),
    }


# --------------------------------------------------------------------------- #
# Pure-JAX reference (mirrors the PyTorch module op-for-op) for validation
# --------------------------------------------------------------------------- #
def cnn_actor_reference(tp, x):
    batch = x.shape[0]
    y = x.reshape(batch, 1, 25, 25).astype(jnp.float32)

    def bn(z, g, b):
        mean = jnp.mean(z, axis=(0, 2, 3), keepdims=True)
        var = jnp.mean((z - mean) ** 2, axis=(0, 2, 3), keepdims=True)
        return ((z - mean) * jax.lax.rsqrt(var + EPS)
                * g.reshape(1, -1, 1, 1) + b.reshape(1, -1, 1, 1))

    def maxpool(z, k, s):
        return jax.lax.reduce_window(z, -jnp.inf, jax.lax.max,
                                     (1, 1, k, k), (1, 1, s, s), 'VALID')

    y = jax.lax.conv_general_dilated(y, tp['conv1_w'], (2, 2), 'VALID',
                                     dimension_numbers=('NCHW', 'OIHW', 'NCHW'))
    y = jnp.maximum(bn(y + tp['conv1_b'].reshape(1, -1, 1, 1),
                       tp['bn1_g'], tp['bn1_b']), 0.0)
    y = maxpool(y, 2, 2)
    y = jax.lax.conv_general_dilated(y, tp['conv2_w'], (1, 1), 'VALID',
                                     dimension_numbers=('NCHW', 'OIHW', 'NCHW'))
    y = jnp.maximum(bn(y + tp['conv2_b'].reshape(1, -1, 1, 1),
                       tp['bn2_g'], tp['bn2_b']), 0.0)
    y = maxpool(y, 2, 1)
    f = y.reshape(batch, -1)                               # torch nn.Flatten
    h = jnp.maximum(f @ tp['l1_w'].T + tp['l1_b'], 0.0)
    return jax.nn.softmax(h @ tp['l2_w'].T + tp['l2_b'], axis=-1)


if __name__ == "__main__":
    key = jax.random.PRNGKey(0)
    k_param, k_x = jax.random.split(key)

    batch, state_space, action_space = 2, 625, 4
    torch_params = init_torch_params(k_param, action_space)
    params = pack_params(torch_params)
    x = jax.random.uniform(k_x, (batch, state_space), jnp.float32)

    probs = jax.block_until_ready(cnn_actor_forward(params, x))

    assert probs.shape == (batch, action_space)
    assert bool(jnp.all(jnp.abs(jnp.sum(probs, axis=-1) - 1.0) < 1e-2))
    ref = cnn_actor_reference(torch_params, x)
    assert bool(jnp.all(jnp.abs(probs - ref) < 1e-2)), (probs, ref)
    print("KERNEL_OK")
</pallas_src>

<mosaic_0001>
module attributes {stable_mosaic.version = 11 : i64} {
  func.func @_fused_actor_kernel(%arg0: memref<16x256xf32, #tpu.memory_space<vmem>>, %arg1: memref<8x16xf32, #tpu.memory_space<vmem>>, %arg2: memref<8x1xf32, #tpu.memory_space<vmem>>, %arg3: memref<8x1xf32, #tpu.memory_space<vmem>>, %arg4: memref<9x32x8xf32, #tpu.memory_space<vmem>>, %arg5: memref<32x1xf32, #tpu.memory_space<vmem>>, %arg6: memref<32x1xf32, #tpu.memory_space<vmem>>, %arg7: memref<4x64x32xf32, #tpu.memory_space<vmem>>, %arg8: memref<64x1xf32, #tpu.memory_space<vmem>>, %arg9: memref<4x64xf32, #tpu.memory_space<vmem>>, %arg10: memref<4x1xf32, #tpu.memory_space<vmem>>, %arg11: memref<4x2xf32, #tpu.memory_space<vmem>>) attributes {dimension_semantics = [], scalar_prefetch = 0 : i64, scratch_operands = 0 : i64, tpu.core_type = #tpu.core_type<tc>} {
    %c0 = arith.constant 0 : index
    %c0_0 = arith.constant 0 : index
    %0 = vector.load %arg1[%c0, %c0_0] : memref<8x16xf32, #tpu.memory_space<vmem>>, vector<8x16xf32>
    %c0_1 = arith.constant 0 : index
    %c0_2 = arith.constant 0 : index
    %1 = vector.load %arg0[%c0_1, %c0_2] : memref<16x256xf32, #tpu.memory_space<vmem>>, vector<16x256xf32>
    %cst = arith.constant dense<0.000000e+00> : vector<8x256xf32>
    %2 = tpu.matmul %0, %1, %cst {dimension_numbers = #tpu.dot_dimension_numbers<[1], [0], [0], [1], [0, 0, 1, 1], [], []>} : vector<8x16xf32>, vector<16x256xf32>, vector<8x256xf32> -> vector<8x256xf32>
    %c0_3 = arith.constant 0 : index
    %c0_4 = arith.constant 0 : index
    %3 = vector.load %arg2[%c0_3, %c0_4] : memref<8x1xf32, #tpu.memory_space<vmem>>, vector<8x1xf32>
    %c0_5 = arith.constant 0 : index
    %c0_6 = arith.constant 0 : index
    %4 = vector.load %arg3[%c0_5, %c0_6] : memref<8x1xf32, #tpu.memory_space<vmem>>, vector<8x1xf32>
    %cst_7 = arith.constant dense<0.000000e+00> : vector<8xf32>
    %5 = vector.multi_reduction <add>, %2, %cst_7 [1] : vector<8x256xf32> to vector<8xf32>
    %6 = vector.shape_cast %5 : vector<8xf32> to vector<8x1xf32>
    %cst_8 = arith.constant 0.00413223123 : f32
    %7 = vector.broadcast %cst_8 : f32 to vector<8x1xf32>
    %8 = arith.mulf %6, %7 : vector<8x1xf32>
    %9 = arith.mulf %2, %2 : vector<8x256xf32>
    %cst_9 = arith.constant dense<0.000000e+00> : vector<8xf32>
    %10 = vector.multi_reduction <add>, %9, %cst_9 [1] : vector<8x256xf32> to vector<8xf32>
    %11 = vector.shape_cast %10 : vector<8xf32> to vector<8x1xf32>
    %cst_10 = arith.constant 0.00413223123 : f32
    %12 = vector.broadcast %cst_10 : f32 to vector<8x1xf32>
    %13 = arith.mulf %11, %12 : vector<8x1xf32>
    %14 = arith.mulf %8, %8 : vector<8x1xf32>
    %15 = arith.subf %13, %14 : vector<8x1xf32>
    %cst_11 = arith.constant 0.000000e+00 : f32
    %16 = vector.broadcast %cst_11 : f32 to vector<8x1xf32>
    %17 = arith.maximumf %15, %16 : vector<8x1xf32>
    %cst_12 = arith.constant 9.99999974E-6 : f32
    %18 = vector.broadcast %cst_12 : f32 to vector<8x1xf32>
    %19 = arith.addf %17, %18 : vector<8x1xf32>
    %20 = math.rsqrt %19 : vector<8x1xf32>
    %21 = arith.mulf %3, %20 : vector<8x1xf32>
    %22 = arith.mulf %8, %21 : vector<8x1xf32>
    %23 = arith.subf %4, %22 : vector<8x1xf32>
    %24 = vector.broadcast %21 : vector<8x1xf32> to vector<8x256xf32>
    %25 = arith.mulf %2, %24 : vector<8x256xf32>
    %26 = vector.broadcast %23 : vector<8x1xf32> to vector<8x256xf32>
    %27 = arith.addf %25, %26 : vector<8x256xf32>
    %cst_13 = arith.constant 0.000000e+00 : f32
    %28 = vector.broadcast %cst_13 : f32 to vector<8x256xf32>
    %29 = arith.maximumf %27, %28 : vector<8x256xf32>
    %c255_i32 = arith.constant 255 : i32
    %30 = tpu.dynamic_rotate %29 by %c255_i32 dim 1 : vector<8x256xf32>, i32 -> vector<8x256xf32>
    %31 = arith.maximumf %29, %30 : vector<8x256xf32>
    %c245_i32 = arith.constant 245 : i32
    %32 = tpu.dynamic_rotate %29 by %c245_i32 dim 1 : vector<8x256xf32>, i32 -> vector<8x256xf32>
    %c244_i32 = arith.constant 244 : i32
    %33 = tpu.dynamic_rotate %29 by %c244_i32 dim 1 : vector<8x256xf32>, i32 -> vector<8x256xf32>
    %34 = arith.maximumf %32, %33 : vector<8x256xf32>
    %35 = arith.maximumf %31, %34 : vector<8x256xf32>
    %c0_14 = arith.constant 0 : index
    %c0_15 = arith.constant 0 : index
    %c0_16 = arith.constant 0 : index
    %36 = vector.load %arg4[%c0_14, %c0_15, %c0_16] : memref<9x32x8xf32, #tpu.memory_space<vmem>>, vector<1x32x8xf32>
    %37 = vector.shape_cast %36 : vector<1x32x8xf32> to vector<32x8xf32>
    %cst_17 = arith.constant dense<0.000000e+00> : vector<32x256xf32>
    %38 = tpu.matmul %37, %35, %cst_17 {dimension_numbers = #tpu.dot_dimension_numbers<[1], [0], [0], [1], [0, 0, 1, 1], [], []>} : vector<32x8xf32>, vector<8x256xf32>, vector<32x256xf32> -> vector<32x256xf32>
    %c1 = arith.constant 1 : index
    %c0_18 = arith.constant 0 : index
    %c0_19 = arith.constant 0 : index
    %39 = vector.load %arg4[%c1, %c0_18, %c0_19] : memref<9x32x8xf32, #tpu.memory_space<vmem>>, vector<1x32x8xf32>
    %40 = vector.shape_cast %39 : vector<1x32x8xf32> to vector<32x8xf32>
    %c254_i32 = arith.constant 254 : i32
    %41 = tpu.dynamic_rotate %35 by %c254_i32 dim 1 : vector<8x256xf32>, i32 -> vector<8x256xf32>
    %cst_20 = arith.constant dense<0.000000e+00> : vector<32x256xf32>
    %42 = tpu.matmul %40, %41, %cst_20 {dimension_numbers = #tpu.dot_dimension_numbers<[1], [0], [0], [1], [0, 0, 1, 1], [], []>} : vector<32x8xf32>, vector<8x256xf32>, vector<32x256xf32> -> vector<32x256xf32>
    %43 = arith.addf %38, %42 : vector<32x256xf32>
    %c2 = arith.constant 2 : index
    %c0_21 = arith.constant 0 : index
    %c0_22 = arith.constant 0 : index
    %44 = vector.load %arg4[%c2, %c0_21, %c0_22] : memref<9x32x8xf32, #tpu.memory_space<vmem>>, vector<1x32x8xf32>
    %45 = vector.shape_cast %44 : vector<1x32x8xf32> to vector<32x8xf32>
    %c252_i32 = arith.constant 252 : i32
    %46 = tpu.dynamic_rotate %35 by %c252_i32 dim 1 : vector<8x256xf32>, i32 -> vector<8x256xf32>
    %cst_23 = arith.constant dense<0.000000e+00> : vector<32x256xf32>
    %47 = tpu.matmul %45, %46, %cst_23 {dimension_numbers = #tpu.dot_dimension_numbers<[1], [0], [0], [1], [0, 0, 1, 1], [], []>} : vector<32x8xf32>, vector<8x256xf32>, vector<32x256xf32> -> vector<32x256xf32>
    %48 = arith.addf %43, %47 : vector<32x256xf32>
    %c3 = arith.constant 3 : index
    %c0_24 = arith.constant 0 : index
    %c0_25 = arith.constant 0 : index
    %49 = vector.load %arg4[%c3, %c0_24, %c0_25] : memref<9x32x8xf32, #tpu.memory_space<vmem>>, vector<1x32x8xf32>
    %50 = vector.shape_cast %49 : vector<1x32x8xf32> to vector<32x8xf32>
    %c234_i32 = arith.constant 234 : i32
    %51 = tpu.dynamic_rotate %35 by %c234_i32 dim 1 : vector<8x256xf32>, i32 -> vector<8x256xf32>
    %cst_26 = arith.constant dense<0.000000e+00> : vector<32x256xf32>
    %52 = tpu.matmul %50, %51, %cst_26 {dimension_numbers = #tpu.dot_dimension_numbers<[1], [0], [0], [1], [0, 0, 1, 1], [], []>} : vector<32x8xf32>, vector<8x256xf32>, vector<32x256xf32> -> vector<32x256xf32>
    %53 = arith.addf %48, %52 : vector<32x256xf32>
    %c4 = arith.constant 4 : index
    %c0_27 = arith.constant 0 : index
    %c0_28 = arith.constant 0 : index
    %54 = vector.load %arg4[%c4, %c0_27, %c0_28] : memref<9x32x8xf32, #tpu.memory_space<vmem>>, vector<1x32x8xf32>
    %55 = vector.shape_cast %54 : vector<1x32x8xf32> to vector<32x8xf32>
    %c232_i32 = arith.constant 232 : i32
    %56 = tpu.dynamic_rotate %35 by %c232_i32 dim 1 : vector<8x256xf32>, i32 -> vector<8x256xf32>
    %cst_29 = arith.constant dense<0.000000e+00> : vector<32x256xf32>
    %57 = tpu.matmul %55, %56, %cst_29 {dimension_numbers = #tpu.dot_dimension_numbers<[1], [0], [0], [1], [0, 0, 1, 1], [], []>} : vector<32x8xf32>, vector<8x256xf32>, vector<32x256xf32> -> vector<32x256xf32>
    %58 = arith.addf %53, %57 : vector<32x256xf32>
    %c5 = arith.constant 5 : index
    %c0_30 = arith.constant 0 : index
    %c0_31 = arith.constant 0 : index
    %59 = vector.load %arg4[%c5, %c0_30, %c0_31] : memref<9x32x8xf32, #tpu.memory_space<vmem>>, vector<1x32x8xf32>
    %60 = vector.shape_cast %59 : vector<1x32x8xf32> to vector<32x8xf32>
    %c230_i32 = arith.constant 230 : i32
    %61 = tpu.dynamic_rotate %35 by %c230_i32 dim 1 : vector<8x256xf32>, i32 -> vector<8x256xf32>
    %cst_32 = arith.constant dense<0.000000e+00> : vector<32x256xf32>
    %62 = tpu.matmul %60, %61, %cst_32 {dimension_numbers = #tpu.dot_dimension_numbers<[1], [0], [0], [1], [0, 0, 1, 1], [], []>} : vector<32x8xf32>, vector<8x256xf32>, vector<32x256xf32> -> vector<32x256xf32>
    %63 = arith.addf %58, %62 : vector<32x256xf32>
    %c6 = arith.constant 6 : index
    %c0_33 = arith.constant 0 : index
    %c0_34 = arith.constant 0 : index
    %64 = vector.load %arg4[%c6, %c0_33, %c0_34] : memref<9x32x8xf32, #tpu.memory_space<vmem>>, vector<1x32x8xf32>
    %65 = vector.shape_cast %64 : vector<1x32x8xf32> to vector<32x8xf32>
    %c212_i32 = arith.constant 212 : i32
    %66 = tpu.dynamic_rotate %35 by %c212_i32 dim 1 : vector<8x256xf32>, i32 -> vector<8x256xf32>
    %cst_35 = arith.constant dense<0.000000e+00> : vector<32x256xf32>
    %67 = tpu.matmul %65, %66, %cst_35 {dimension_numbers = #tpu.dot_dimension_numbers<[1], [0], [0], [1], [0, 0, 1, 1], [], []>} : vector<32x8xf32>, vector<8x256xf32>, vector<32x256xf32> -> vector<32x256xf32>
    %68 = arith.addf %63, %67 : vector<32x256xf32>
    %c7 = arith.constant 7 : index
    %c0_36 = arith.constant 0 : index
    %c0_37 = arith.constant 0 : index
    %69 = vector.load %arg4[%c7, %c0_36, %c0_37] : memref<9x32x8xf32, #tpu.memory_space<vmem>>, vector<1x32x8xf32>
    %70 = vector.shape_cast %69 : vector<1x32x8xf32> to vector<32x8xf32>
    %c210_i32 = arith.constant 210 : i32
    %71 = tpu.dynamic_rotate %35 by %c210_i32 dim 1 : vector<8x256xf32>, i32 -> vector<8x256xf32>
    %cst_38 = arith.constant dense<0.000000e+00> : vector<32x256xf32>
    %72 = tpu.matmul %70, %71, %cst_38 {dimension_numbers = #tpu.dot_dimension_numbers<[1], [0], [0], [1], [0, 0, 1, 1], [], []>} : vector<32x8xf32>, vector<8x256xf32>, vector<32x256xf32> -> vector<32x256xf32>
    %73 = arith.addf %68, %72 : vector<32x256xf32>
    %c8 = arith.constant 8 : index
    %c0_39 = arith.constant 0 : index
    %c0_40 = arith.constant 0 : index
    %74 = vector.load %arg4[%c8, %c0_39, %c0_40] : memref<9x32x8xf32, #tpu.memory_space<vmem>>, vector<1x32x8xf32>
    %75 = vector.shape_cast %74 : vector<1x32x8xf32> to vector<32x8xf32>
    %c208_i32 = arith.constant 208 : i32
    %76 = tpu.dynamic_rotate %35 by %c208_i32 dim 1 : vector<8x256xf32>, i32 -> vector<8x256xf32>
    %cst_41 = arith.constant dense<0.000000e+00> : vector<32x256xf32>
    %77 = tpu.matmul %75, %76, %cst_41 {dimension_numbers = #tpu.dot_dimension_numbers<[1], [0], [0], [1], [0, 0, 1, 1], [], []>} : vector<32x8xf32>, vector<8x256xf32>, vector<32x256xf32> -> vector<32x256xf32>
    %78 = arith.addf %73, %77 : vector<32x256xf32>
    %79 = tpu.iota {dimensions = array<i32: 1>} : vector<1x256xi32>
    %c127_i32 = arith.constant 127 : i32
    %80 = vector.broadcast %c127_i32 : i32 to vector<1x256xi32>
    %81 = arith.andi %79, %80 : vector<1x256xi32>
    %c0_i32 = arith.constant 0 : i32
    %82 = vector.broadcast %c0_i32 : i32 to vector<1x256xi32>
    %83 = arith.cmpi eq, %81, %82 : vector<1x256xi32>
    %c2_i32 = arith.constant 2 : i32
    %84 = vector.broadcast %c2_i32 : i32 to vector<1x256xi32>
    %85 = arith.cmpi eq, %81, %84 : vector<1x256xi32>
    %c4_i32 = arith.constant 4 : i32
    %86 = vector.broadcast %c4_i32 : i32 to vector<1x256xi32>
    %87 = arith.cmpi eq, %81, %86 : vector<1x256xi32>
    %c22_i32 = arith.constant 22 : i32
    %88 = vector.broadcast %c22_i32 : i32 to vector<1x256xi32>
    %89 = arith.cmpi eq, %81, %88 : vector<1x256xi32>
    %c24_i32 = arith.constant 24 : i32
    %90 = vector.broadcast %c24_i32 : i32 to vector<1x256xi32>
    %91 = arith.cmpi eq, %81, %90 : vector<1x256xi32>
    %c26_i32 = arith.constant 26 : i32
    %92 = vector.broadcast %c26_i32 : i32 to vector<1x256xi32>
    %93 = arith.cmpi eq, %81, %92 : vector<1x256xi32>
    %c44_i32 = arith.constant 44 : i32
    %94 = vector.broadcast %c44_i32 : i32 to vector<1x256xi32>
    %95 = arith.cmpi eq, %81, %94 : vector<1x256xi32>
    %c46_i32 = arith.constant 46 : i32
    %96 = vector.broadcast %c46_i32 : i32 to vector<1x256xi32>
    %97 = arith.cmpi eq, %81, %96 : vector<1x256xi32>
    %c48_i32 = arith.constant 48 : i32
    %98 = vector.broadcast %c48_i32 : i32 to vector<1x256xi32>
    %99 = arith.cmpi eq, %81, %98 : vector<1x256xi32>
    %100 = arith.ori %83, %85 : vector<1x256xi1>
    %101 = arith.ori %100, %87 : vector<1x256xi1>
    %102 = arith.ori %101, %89 : vector<1x256xi1>
    %103 = arith.ori %102, %91 : vector<1x256xi1>
    %104 = arith.ori %103, %93 : vector<1x256xi1>
    %105 = arith.ori %104, %95 : vector<1x256xi1>
    %106 = arith.ori %105, %97 : vector<1x256xi1>
    %107 = arith.ori %106, %99 : vector<1x256xi1>
    %108 = arith.extui %107 : vector<1x256xi1> to vector<1x256xi32>
    %109 = arith.sitofp %108 : vector<1x256xi32> to vector<1x256xf32>
    %c0_42 = arith.constant 0 : index
    %c0_43 = arith.constant 0 : index
    %110 = vector.load %arg5[%c0_42, %c0_43] : memref<32x1xf32, #tpu.memory_space<vmem>>, vector<32x1xf32>
    %c0_44 = arith.constant 0 : index
    %c0_45 = arith.constant 0 : index
    %111 = vector.load %arg6[%c0_44, %c0_45] : memref<32x1xf32, #tpu.memory_space<vmem>>, vector<32x1xf32>
    %112 = vector.broadcast %109 : vector<1x256xf32> to vector<32x256xf32>
    %113 = arith.mulf %78, %112 : vector<32x256xf32>
    %cst_46 = arith.constant dense<0.000000e+00> : vector<32xf32>
    %114 = vector.multi_reduction <add>, %113, %cst_46 [1] : vector<32x256xf32> to vector<32xf32>
    %115 = vector.shape_cast %114 : vector<32xf32> to vector<32x1xf32>
    %cst_47 = arith.constant 0.055555556 : f32
    %116 = vector.broadcast %cst_47 : f32 to vector<32x1xf32>
    %117 = arith.mulf %115, %116 : vector<32x1xf32>
    %118 = arith.mulf %113, %78 : vector<32x256xf32>
    %cst_48 = arith.constant dense<0.000000e+00> : vector<32xf32>
    %119 = vector.multi_reduction <add>, %118, %cst_48 [1] : vector<32x256xf32> to vector<32xf32>
    %120 = vector.shape_cast %119 : vector<32xf32> to vector<32x1xf32>
    %cst_49 = arith.constant 0.055555556 : f32
    %121 = vector.broadcast %cst_49 : f32 to vector<32x1xf32>
    %122 = arith.mulf %120, %121 : vector<32x1xf32>
    %123 = arith.mulf %117, %117 : vector<32x1xf32>
    %124 = arith.subf %122, %123 : vector<32x1xf32>
    %cst_50 = arith.constant 0.000000e+00 : f32
    %125 = vector.broadcast %cst_50 : f32 to vector<32x1xf32>
    %126 = arith.maximumf %124, %125 : vector<32x1xf32>
    %cst_51 = arith.constant 9.99999974E-6 : f32
    %127 = vector.broadcast %cst_51 : f32 to vector<32x1xf32>
    %128 = arith.addf %126, %127 : vector<32x1xf32>
    %129 = math.rsqrt %128 : vector<32x1xf32>
    %130 = arith.mulf %110, %129 : vector<32x1xf32>
    %131 = arith.mulf %117, %130 : vector<32x1xf32>
    %132 = arith.subf %111, %131 : vector<32x1xf32>
    %133 = vector.broadcast %130 : vector<32x1xf32> to vector<32x256xf32>
    %134 = arith.mulf %78, %133 : vector<32x256xf32>
    %135 = vector.broadcast %132 : vector<32x1xf32> to vector<32x256xf32>
    %136 = arith.addf %134, %135 : vector<32x256xf32>
    %cst_52 = arith.constant 0.000000e+00 : f32
    %137 = vector.broadcast %cst_52 : f32 to vector<32x256xf32>
    %138 = arith.maximumf %136, %137 : vector<32x256xf32>
    %c254_i32_53 = arith.constant 254 : i32
    %139 = tpu.dynamic_rotate %138 by %c254_i32_53 dim 1 : vector<32x256xf32>, i32 -> vector<32x256xf32>
    %140 = arith.maximumf %138, %139 : vector<32x256xf32>
    %c234_i32_54 = arith.constant 234 : i32
    %141 = tpu.dynamic_rotate %138 by %c234_i32_54 dim 1 : vector<32x256xf32>, i32 -> vector<32x256xf32>
    %c232_i32_55 = arith.constant 232 : i32
    %142 = tpu.dynamic_rotate %138 by %c232_i32_55 dim 1 : vector<32x256xf32>, i32 -> vector<32x256xf32>
    %143 = arith.maximumf %141, %142 : vector<32x256xf32>
    %144 = arith.maximumf %140, %143 : vector<32x256xf32>
    %c0_56 = arith.constant 0 : index
    %c0_57 = arith.constant 0 : index
    %c0_58 = arith.constant 0 : index
    %145 = vector.load %arg7[%c0_56, %c0_57, %c0_58] : memref<4x64x32xf32, #tpu.memory_space<vmem>>, vector<1x64x32xf32>
    %146 = vector.shape_cast %145 : vector<1x64x32xf32> to vector<64x32xf32>
    %cst_59 = arith.constant dense<0.000000e+00> : vector<64x256xf32>
    %147 = tpu.matmul %146, %144, %cst_59 {dimension_numbers = #tpu.dot_dimension_numbers<[1], [0], [0], [1], [0, 0, 1, 1], [], []>} : vector<64x32xf32>, vector<32x256xf32>, vector<64x256xf32> -> vector<64x256xf32>
    %c1_60 = arith.constant 1 : index
    %c0_61 = arith.constant 0 : index
    %c0_62 = arith.constant 0 : index
    %148 = vector.load %arg7[%c1_60, %c0_61, %c0_62] : memref<4x64x32xf32, #tpu.memory_space<vmem>>, vector<1x64x32xf32>
    %149 = vector.shape_cast %148 : vector<1x64x32xf32> to vector<64x32xf32>
    %c254_i32_63 = arith.constant 254 : i32
    %150 = tpu.dynamic_rotate %144 by %c254_i32_63 dim 1 : vector<32x256xf32>, i32 -> vector<32x256xf32>
    %cst_64 = arith.constant dense<0.000000e+00> : vector<64x256xf32>
    %151 = tpu.matmul %149, %150, %cst_64 {dimension_numbers = #tpu.dot_dimension_numbers<[1], [0], [0], [1], [0, 0, 1, 1], [], []>} : vector<64x32xf32>, vector<32x256xf32>, vector<64x256xf32> -> vector<64x256xf32>
    %152 = arith.addf %147, %151 : vector<64x256xf32>
    %c2_65 = arith.constant 2 : index
    %c0_66 = arith.constant 0 : index
    %c0_67 = arith.constant 0 : index
    %153 = vector.load %arg7[%c2_65, %c0_66, %c0_67] : memref<4x64x32xf32, #tpu.memory_space<vmem>>, vector<1x64x32xf32>
    %154 = vector.shape_cast %153 : vector<1x64x32xf32> to vector<64x32xf32>
    %c234_i32_68 = arith.constant 234 : i32
    %155 = tpu.dynamic_rotate %144 by %c234_i32_68 dim 1 : vector<32x256xf32>, i32 -> vector<32x256xf32>
    %cst_69 = arith.constant dense<0.000000e+00> : vector<64x256xf32>
    %156 = tpu.matmul %154, %155, %cst_69 {dimension_numbers = #tpu.dot_dimension_numbers<[1], [0], [0], [1], [0, 0, 1, 1], [], []>} : vector<64x32xf32>, vector<32x256xf32>, vector<64x256xf32> -> vector<64x256xf32>
    %157 = arith.addf %152, %156 : vector<64x256xf32>
    %c3_70 = arith.constant 3 : index
    %c0_71 = arith.constant 0 : index
    %c0_72 = arith.constant 0 : index
    %158 = vector.load %arg7[%c3_70, %c0_71, %c0_72] : memref<4x64x32xf32, #tpu.memory_space<vmem>>, vector<1x64x32xf32>
    %159 = vector.shape_cast %158 : vector<1x64x32xf32> to vector<64x32xf32>
    %c232_i32_73 = arith.constant 232 : i32
    %160 = tpu.dynamic_rotate %144 by %c232_i32_73 dim 1 : vector<32x256xf32>, i32 -> vector<32x256xf32>
    %cst_74 = arith.constant dense<0.000000e+00> : vector<64x256xf32>
    %161 = tpu.matmul %159, %160, %cst_74 {dimension_numbers = #tpu.dot_dimension_numbers<[1], [0], [0], [1], [0, 0, 1, 1], [], []>} : vector<64x32xf32>, vector<32x256xf32>, vector<64x256xf32> -> vector<64x256xf32>
    %162 = arith.addf %157, %161 : vector<64x256xf32>
    %163 = tpu.iota {dimensions = array<i32: 0>} : vector<256x2xi32>
    %164 = tpu.iota {dimensions = array<i32: 1>} : vector<256x2xi32>
    %c128_i32 = arith.constant 128 : i32
    %165 = vector.broadcast %c128_i32 : i32 to vector<256x2xi32>
    %166 = arith.muli %164, %165 : vector<256x2xi32>
    %167 = arith.cmpi eq, %163, %166 : vector<256x2xi32>
    %168 = arith.extui %167 : vector<256x2xi1> to vector<256x2xi32>
    %169 = arith.sitofp %168 : vector<256x2xi32> to vector<256x2xf32>
    %cst_75 = arith.constant dense<0.000000e+00> : vector<64x2xf32>
    %170 = tpu.matmul %162, %169, %cst_75 {dimension_numbers = #tpu.dot_dimension_numbers<[1], [0], [0], [1], [0, 0, 1, 1], [], []>} : vector<64x256xf32>, vector<256x2xf32>, vector<64x2xf32> -> vector<64x2xf32>
    %c0_76 = arith.constant 0 : index
    %c0_77 = arith.constant 0 : index
    %171 = vector.load %arg8[%c0_76, %c0_77] : memref<64x1xf32, #tpu.memory_space<vmem>>, vector<64x1xf32>
    %172 = vector.broadcast %171 : vector<64x1xf32> to vector<64x2xf32>
    %173 = arith.addf %170, %172 : vector<64x2xf32>
    %cst_78 = arith.constant 0.000000e+00 : f32
    %174 = vector.broadcast %cst_78 : f32 to vector<64x2xf32>
    %175 = arith.maximumf %173, %174 : vector<64x2xf32>
    %c0_79 = arith.constant 0 : index
    %c0_80 = arith.constant 0 : index
    %176 = vector.load %arg9[%c0_79, %c0_80] : memref<4x64xf32, #tpu.memory_space<vmem>>, vector<4x64xf32>
    %cst_81 = arith.constant dense<0.000000e+00> : vector<4x2xf32>
    %177 = tpu.matmul %176, %175, %cst_81 {dimension_numbers = #tpu.dot_dimension_numbers<[1], [0], [0], [1], [0, 0, 1, 1], [], []>} : vector<4x64xf32>, vector<64x2xf32>, vector<4x2xf32> -> vector<4x2xf32>
    %c0_82 = arith.constant 0 : index
    %c0_83 = arith.constant 0 : index
    %178 = vector.load %arg10[%c0_82, %c0_83] : memref<4x1xf32, #tpu.memory_space<vmem>>, vector<4x1xf32>
    %179 = vector.broadcast %178 : vector<4x1xf32> to vector<4x2xf32>
    %180 = arith.addf %177, %179 : vector<4x2xf32>
    %cst_84 = arith.constant dense<0xFF800000> : vector<2xf32>
    %181 = vector.multi_reduction <maximumf>, %180, %cst_84 [0] : vector<4x2xf32> to vector<2xf32>
    %182 = vector.shape_cast %181 : vector<2xf32> to vector<1x2xf32>
    %183 = vector.broadcast %182 : vector<1x2xf32> to vector<4x2xf32>
    %184 = arith.subf %180, %183 : vector<4x2xf32>
    %185 = math.exp %184 : vector<4x2xf32>
    %cst_85 = arith.constant dense<0.000000e+00> : vector<2xf32>
    %186 = vector.multi_reduction <add>, %185, %cst_85 [0] : vector<4x2xf32> to vector<2xf32>
    %187 = vector.shape_cast %186 : vector<2xf32> to vector<1x2xf32>
    %188 = tpu.reciprocal %187 {approx = true} : vector<1x2xf32> -> vector<1x2xf32>
    %189 = vector.broadcast %188 : vector<1x2xf32> to vector<4x2xf32>
    %190 = arith.mulf %185, %189 : vector<4x2xf32>
    %c0_86 = arith.constant 0 : index
    %c0_87 = arith.constant 0 : index
    %191 = vector.load %arg11[%c0_86, %c0_87] : memref<4x2xf32, #tpu.memory_space<vmem>>, vector<4x2xf32>
    tpu.vector_store %arg11[%c0_86, %c0_87], %190 {strides = array<i32>} : memref<4x2xf32, #tpu.memory_space<vmem>>, vector<4x2xf32>,
    return
  }
}

</mosaic_0001>

<llo_original>
// kernel: cnn_actor_forward.1
$region0: #{cnn_actor_forward.1}
  #allocation0 [shape = 'u32[]', space=smem, size = 0x4, offset = 0x4, fixed_abs, tag = 'smem constant byte address 0x4 - core index']
  #allocation1 [shape = 'u32[72,128]{1,0:T(1,128)}', space=vmem, size = 0x9000, scoped, tag = 'internal scratch']
  %s0 = inlined_call_operand.vmem [shape: f32[16,256], index: 0, kind: input, shape index: {}]
  %s1 = inlined_call_operand.vmem [shape: f32[8,16], index: 1, kind: input, shape index: {}]
  %s2 = inlined_call_operand.vmem [shape: f32[8,1], index: 2, kind: input, shape index: {}]
  %s3 = inlined_call_operand.vmem [shape: f32[8,1], index: 3, kind: input, shape index: {}]
  %s4 = inlined_call_operand.vmem [shape: f32[9,32,8], index: 4, kind: input, shape index: {}]
  %s5 = inlined_call_operand.vmem [shape: f32[32,1], index: 5, kind: input, shape index: {}]
  %s6 = inlined_call_operand.vmem [shape: f32[32,1], index: 6, kind: input, shape index: {}]
  %s7 = inlined_call_operand.vmem [shape: f32[4,64,32], index: 7, kind: input, shape index: {}]
  %s8 = inlined_call_operand.vmem [shape: f32[64,1], index: 8, kind: input, shape index: {}]
  %s9 = inlined_call_operand.vmem [shape: f32[4,64], index: 9, kind: input, shape index: {}]
  %s10 = inlined_call_operand.vmem [shape: f32[4,1], index: 10, kind: input, shape index: {}]
  %s11 = inlined_call_operand.vmem [shape: f32[4,2], index: 11, kind: output, shape index: {}]
  %s12 = sld [smem:[#allocation0]]
  $region54: #{cnn_actor_forward.1} parent=0
    _
  %s14 = ssub.s32 1, %s12
  %s15 = scalar_select 0, %s14, %s12
  // Predicated region
  $region2: #{cnn_actor_forward.1} parent=0 // pred_check
    _
  $region3: #{cnn_actor_forward.1} parent=0 // pred_check_branch
    %17 = sbr.rel (0) target = $region5
  $region4: #{cnn_actor_forward.1} parent=0 // pred_region
    _
  $region5: #{cnn_actor_forward.1} parent=0 // pred_fallthru
    _
  // Predicated region
  $region6: #{cnn_actor_forward.1} parent=0 // pred_check
    _
  $region7: #{cnn_actor_forward.1} parent=0 // pred_check_branch
    %19 = sbr.rel (0) target = $region9
  $region8: #{cnn_actor_forward.1} parent=0 // pred_region
    _
  $region9: #{cnn_actor_forward.1} parent=0 // pred_fallthru
    _
  // Predicated region
  $region10: #{cnn_actor_forward.1} parent=0 // pred_check
    _
  $region11: #{cnn_actor_forward.1} parent=0 // pred_check_branch
    %21 = sbr.rel (0) target = $region13
  $region12: #{cnn_actor_forward.1} parent=0 // pred_region
    _
  $region13: #{cnn_actor_forward.1} parent=0 // pred_fallthru
    _
  // Predicated region
  $region14: #{cnn_actor_forward.1} parent=0 // pred_check
    _
  $region15: #{cnn_actor_forward.1} parent=0 // pred_check_branch
    %23 = sbr.rel (0) target = $region17
  $region16: #{cnn_actor_forward.1} parent=0 // pred_region
    _
  $region17: #{cnn_actor_forward.1} parent=0 // pred_fallthru
    _
  // Predicated region
  $region18: #{cnn_actor_forward.1} parent=0 // pred_check
    _
  $region19: #{cnn_actor_forward.1} parent=0 // pred_check_branch
    %25 = sbr.rel (0) target = $region21
  $region20: #{cnn_actor_forward.1} parent=0 // pred_region
    _
  $region21: #{cnn_actor_forward.1} parent=0 // pred_fallthru
    _
  // Predicated region
  $region22: #{cnn_actor_forward.1} parent=0 // pred_check
    _
  $region23: #{cnn_actor_forward.1} parent=0 // pred_check_branch
    %27 = sbr.rel (0) target = $region25
  $region24: #{cnn_actor_forward.1} parent=0 // pred_region
    _
  $region25: #{cnn_actor_forward.1} parent=0 // pred_fallthru
    _
  // Predicated region
  $region26: #{cnn_actor_forward.1} parent=0 // pred_check
    _
  $region27: #{cnn_actor_forward.1} parent=0 // pred_check_branch
    %29 = sbr.rel (0) target = $region29
  $region28: #{cnn_actor_forward.1} parent=0 // pred_region
    _
  $region29: #{cnn_actor_forward.1} parent=0 // pred_fallthru
    _
  // Predicated region
  $region30: #{cnn_actor_forward.1} parent=0 // pred_check
    _
  $region31: #{cnn_actor_forward.1} parent=0 // pred_check_branch
    %31 = sbr.rel (0) target = $region33
  $region32: #{cnn_actor_forward.1} parent=0 // pred_region
    _
  $region33: #{cnn_actor_forward.1} parent=0 // pred_fallthru
    _
  // Predicated region
  $region34: #{cnn_actor_forward.1} parent=0 // pred_check
    _
  $region35: #{cnn_actor_forward.1} parent=0 // pred_check_branch
    %33 = sbr.rel (0) target = $region37
  $region36: #{cnn_actor_forward.1} parent=0 // pred_region
    _
  $region37: #{cnn_actor_forward.1} parent=0 // pred_fallthru
    _
  // Predicated region
  $region38: #{cnn_actor_forward.1} parent=0 // pred_check
    _
  $region39: #{cnn_actor_forward.1} parent=0 // pred_check_branch
    %35 = sbr.rel (0) target = $region41
  $region40: #{cnn_actor_forward.1} parent=0 // pred_region
    _
  $region41: #{cnn_actor_forward.1} parent=0 // pred_fallthru
    _
  // Predicated region
  $region42: #{cnn_actor_forward.1} parent=0 // pred_check
    _
  $region43: #{cnn_actor_forward.1} parent=0 // pred_check_branch
    %37 = sbr.rel (0) target = $region45
  $region44: #{cnn_actor_forward.1} parent=0 // pred_region
    _
  $region45: #{cnn_actor_forward.1} parent=0 // pred_fallthru
    _
  %v38 = vld [vmem:[%s1] sm:$0xff]
  %v39 = vld [vmem:[%s0] sm:$0xff]
  %v40 = vld [vmem:[%s0 + $0x8] sm:$0xff]
  %v41 = vld [vmem:[%s0 + $0x10] sm:$0xff]
  %v42 = vld [vmem:[%s0 + $0x18] sm:$0xff]
  %vm43 = vcmask 130048
  %v45 = vsel %vm43, %v38, 0
  %47 = vmatpush.msra.mxu0 0.0
  %48 = vmatpush.msra.mxu0 0.0
  %49 = vmatpush.msra.mxu0 0.0
  %50 = vmatpush.msra.mxu0 0.0
  %51 = vmatpush.msra.mxu0 0.0
  %52 = vmatpush.msra.mxu0 0.0
  %53 = vmatpush.msra.mxu0 0.0
  %54 = vmatpush.msra.mxu0 0.0
  %55 = vmatpush.msra.mxu0 0.0
  %56 = vmatpush.msra.mxu0 0.0
  %57 = vmatpush.msra.mxu0 0.0
  %58 = vmatpush.msra.mxu0 0.0
  %59 = vmatpush.msra.mxu0 0.0
  %60 = vmatpush.msra.mxu0 0.0
  %61 = vmatpush.msra.mxu0 %v41
  %62 = vmatpush.msra.mxu0 %v39
  %63 = vmatmul.f32.gmra.mxu0 %v45
  %v64 = vpop.f32.mrf.mxu0
  %v65 = vadd.f32 0.0, %v64
  %66 = vdwg.mxu0
  %67 = vmatpush.msra.mxu0 0.0
  %68 = vmatpush.msra.mxu0 0.0
  %69 = vmatpush.msra.mxu0 0.0
  %70 = vmatpush.msra.mxu0 0.0
  %71 = vmatpush.msra.mxu0 0.0
  %72 = vmatpush.msra.mxu0 0.0
  %73 = vmatpush.msra.mxu0 0.0
  %74 = vmatpush.msra.mxu0 0.0
  %75 = vmatpush.msra.mxu0 0.0
  %76 = vmatpush.msra.mxu0 0.0
  %77 = vmatpush.msra.mxu0 0.0
  %78 = vmatpush.msra.mxu0 0.0
  %79 = vmatpush.msra.mxu0 0.0
  %80 = vmatpush.msra.mxu0 0.0
  %81 = vmatpush.msra.mxu0 %v42
  %82 = vmatpush.msra.mxu0 %v40
  %83 = vmatmul.f32.gmra.mxu0 %v45
  %v84 = vpop.f32.mrf.mxu0
  %v85 = vadd.f32 0.0, %v84
  %86 = vdwg.mxu0
  %v87 = vld [vmem:[%s2] sm:$0xff]
  %v88 = vld [vmem:[%s3] sm:$0xff]
  %v89 = vadd.f32 %v65, %v85
  %90 = vadd.xlane.f32.xlu0 %v89
  %v91 = vpop.xlane.xlu0 %90
  %v92 = vmul.f32 %v91, 0.004132231
  %v93 = vmul.f32 %v65, %v65
  %v94 = vmul.f32 %v85, %v85
  %v95 = vadd.f32 %v93, %v94
  %96 = vadd.xlane.f32.xlu0 %v95
  %v97 = vpop.xlane.xlu0 %96
  %v98 = vmul.f32 %v97, 0.004132231
  %v99 = vmul.f32 %v92, %v92
  %v100 = vsub.f32 %v98, %v99
  %v101 = vmax.f32 %v100, 0.0
  %v102 = vadd.f32 %v101, 1e-05
  %v103 = vrsqrt.pop %v102
  %v104 = vmul.f32 %v103, %v102
  %v105 = vmul.f32 %v104, %v103
  %v106 = vmul.f32 0.5, %v105
  %v107 = vsub.f32 1.5, %v106
  %v108 = vmul.f32 %v103, %v107
  %vm109 = vweird.f32 %v102
  %vm110 = vweird.f32 %v103
  %vm111 = vmor %vm109, %vm110
  %v112 = vsel %vm111, %v103, %v108
  %v113 = vmul.f32 %v87, %v112
  %v114 = vmul.f32 %v92, %v113
  %v115 = vsub.f32 %v88, %v114
  %117 = vset.pattern.permute.xlu0 0
  %118 = vperm.xlu0 %117, %v113
  %v119 = vpop.permute.xlu0 %118
  %v121 = vmul.f32 %v65, %v119
  %v122 = vmul.f32 %v85, %v119
  %124 = vset.pattern.permute.xlu0 0
  %125 = vperm.xlu0 %124, %v115
  %v126 = vpop.permute.xlu0 %125
  %v128 = vadd.f32 %v121, %v126
  %v129 = vadd.f32 %v122, %v126
  %v130 = vmax.f32 %v128, 0.0
  %v131 = vmax.f32 %v129, 0.0
  %132 = vrot.lane.b32.xlu0 %v130, 127
  %v133 = vpop.permute.xlu0 %132
  %134 = vrot.lane.b32.xlu0 %v131, 127
  %v135 = vpop.permute.xlu0 %134
  %v136 = vlaneseq
  %v137 = vand.u32 %v136, 127
  %vm138 = vcmp.lt.s32.totalorder %v137, 127
  %v139 = vsel %vm138, %v133, %v135
  %v140 = vsel %vm138, %v135, %v133
  %v141 = vmax.f32 %v130, %v139
  %v142 = vmax.f32 %v131, %v140
  %143 = vrot.lane.b32.xlu0 %v130, 117
  %v144 = vpop.permute.xlu0 %143
  %145 = vrot.lane.b32.xlu0 %v131, 117
  %v146 = vpop.permute.xlu0 %145
  %vm147 = vcmp.lt.s32.totalorder %v137, 117
  %v148 = vsel %vm147, %v144, %v146
  %v149 = vsel %vm147, %v146, %v144
  %150 = vrot.lane.b32.xlu0 %v130, 116
  %v151 = vpop.permute.xlu0 %150
  %152 = vrot.lane.b32.xlu0 %v131, 116
  %v153 = vpop.permute.xlu0 %152
  %vm154 = vcmp.lt.s32.totalorder %v137, 116
  %v155 = vsel %vm154, %v151, %v153
  %v156 = vsel %vm154, %v153, %v151
  %v157 = vmax.f32 %v148, %v155
  %v158 = vmax.f32 %v149, %v156
  %v159 = vmax.f32 %v141, %v157
  %v160 = vmax.f32 %v142, %v158
  %v161 = vld [vmem:[%s4] sm:$0xff]
  %v162 = vld [vmem:[%s4 + $0x8] sm:$0xff]
  %v163 = vld [vmem:[%s4 + $0x10] sm:$0xff]
  %v164 = vld [vmem:[%s4 + $0x18] sm:$0xff]
  %s165 = scalar_lea.vmem %s4, 32
  %v166 = vld [vmem:[%s165] sm:$0xff]
  %v167 = vld [vmem:[%s165 + $0x8] sm:$0xff]
  %v168 = vld [vmem:[%s165 + $0x10] sm:$0xff]
  %v169 = vld [vmem:[%s165 + $0x18] sm:$0xff]
  %170 = vrot.lane.b32.xlu0 %v159, 126
  %v171 = vpop.permute.xlu0 %170
  %172 = vrot.lane.b32.xlu0 %v160, 126
  %v173 = vpop.permute.xlu0 %172
  %vm174 = vcmp.lt.s32.totalorder %v137, 126
  %v175 = vsel %vm174, %v171, %v173
  %v176 = vsel %vm174, %v173, %v171
  %vm177 = vcmask 64512
  %v179 = vsel %vm177, %v166, 0
  %v182 = vsel %vm177, %v167, 0
  %v185 = vsel %vm177, %v168, 0
  %v188 = vsel %vm177, %v169, 0
  %190 = vmatpush.msra.mxu0 0.0
  %191 = vmatpush.msra.mxu0 0.0
  %192 = vmatpush.msra.mxu0 0.0
  %193 = vmatpush.msra.mxu0 0.0
  %194 = vmatpush.msra.mxu0 0.0
  %195 = vmatpush.msra.mxu0 0.0
  %196 = vmatpush.msra.mxu0 0.0
  %197 = vmatpush.msra.mxu0 0.0
  %198 = vmatpush.msra.mxu0 0.0
  %199 = vmatpush.msra.mxu0 0.0
  %200 = vmatpush.msra.mxu0 0.0
  %201 = vmatpush.msra.mxu0 0.0
  %202 = vmatpush.msra.mxu0 0.0
  %203 = vmatpush.msra.mxu0 0.0
  %204 = vmatpush.msra.mxu0 0.0
  %205 = vmatpush.msra.mxu0 %v175
  %206 = vmatmul.f32.gmra.mxu0 %v179
  %v207 = vpop.f32.mrf.mxu0
  %v208 = vadd.f32 0.0, %v207
  %209 = vmatmul.f32.gmra.mxu0 %v182
  %v210 = vpop.f32.mrf.mxu0
  %v211 = vadd.f32 0.0, %v210
  %212 = vmatmul.f32.gmra.mxu0 %v185
  %v213 = vpop.f32.mrf.mxu0
  %v214 = vadd.f32 0.0, %v213
  %215 = vmatmul.f32.gmra.mxu0 %v188
  %v216 = vpop.f32.mrf.mxu0
  %v217 = vadd.f32 0.0, %v216
  %218 = vdwg.mxu0
  %219 = vmatpush.msra.mxu0 0.0
  %220 = vmatpush.msra.mxu0 0.0
  %221 = vmatpush.msra.mxu0 0.0
  %222 = vmatpush.msra.mxu0 0.0
  %223 = vmatpush.msra.mxu0 0.0
  %224 = vmatpush.msra.mxu0 0.0
  %225 = vmatpush.msra.mxu0 0.0
  %226 = vmatpush.msra.mxu0 0.0
  %227 = vmatpush.msra.mxu0 0.0
  %228 = vmatpush.msra.mxu0 0.0
  %229 = vmatpush.msra.mxu0 0.0
  %230 = vmatpush.msra.mxu0 0.0
  %231 = vmatpush.msra.mxu0 0.0
  %232 = vmatpush.msra.mxu0 0.0
  %233 = vmatpush.msra.mxu0 0.0
  %234 = vmatpush.msra.mxu0 %v176
  %235 = vmatmul.f32.gmra.mxu0 %v179
  %v236 = vpop.f32.mrf.mxu0
  %v237 = vadd.f32 0.0, %v236
  %238 = vmatmul.f32.gmra.mxu0 %v182
  %v239 = vpop.f32.mrf.mxu0
  %v240 = vadd.f32 0.0, %v239
  %241 = vmatmul.f32.gmra.mxu0 %v185
  %v242 = vpop.f32.mrf.mxu0
  %v243 = vadd.f32 0.0, %v242
  %244 = vmatmul.f32.gmra.mxu0 %v188
  %v245 = vpop.f32.mrf.mxu0
  %v246 = vadd.f32 0.0, %v245
  %247 = vdwg.mxu0
  %v249 = vsel %vm177, %v161, 0
  %v252 = vsel %vm177, %v162, 0
  %v255 = vsel %vm177, %v163, 0
  %v258 = vsel %vm177, %v164, 0
  %260 = vmatpush.msra.mxu0 0.0
  %261 = vmatpush.msra.mxu0 0.0
  %262 = vmatpush.msra.mxu0 0.0
  %263 = vmatpush.msra.mxu0 0.0
  %264 = vmatpush.msra.mxu0 0.0
  %265 = vmatpush.msra.mxu0 0.0
  %266 = vmatpush.msra.mxu0 0.0
  %267 = vmatpush.msra.mxu0 0.0
  %268 = vmatpush.msra.mxu0 0.0
  %269 = vmatpush.msra.mxu0 0.0
  %270 = vmatpush.msra.mxu0 0.0
  %271 = vmatpush.msra.mxu0 0.0
  %272 = vmatpush.msra.mxu0 0.0
  %273 = vmatpush.msra.mxu0 0.0
  %274 = vmatpush.msra.mxu0 0.0
  %275 = vmatpush.msra.mxu0 %v159
  %276 = vmatmul.f32.gmra.mxu0 %v249
  %v277 = vpop.f32.mrf.mxu0
  %v278 = vadd.f32 %v208, %v277
  %279 = vmatmul.f32.gmra.mxu0 %v252
  %v280 = vpop.f32.mrf.mxu0
  %v281 = vadd.f32 %v211, %v280
  %282 = vmatmul.f32.gmra.mxu0 %v255
  %v283 = vpop.f32.mrf.mxu0
  %v284 = vadd.f32 %v214, %v283
  %285 = vmatmul.f32.gmra.mxu0 %v258
  %v286 = vpop.f32.mrf.mxu0
  %v287 = vadd.f32 %v217, %v286
  %288 = vdwg.mxu0
  %289 = vmatpush.msra.mxu0 0.0
  %290 = vmatpush.msra.mxu0 0.0
  %291 = vmatpush.msra.mxu0 0.0
  %292 = vmatpush.msra.mxu0 0.0
  %293 = vmatpush.msra.mxu0 0.0
  %294 = vmatpush.msra.mxu0 0.0
  %295 = vmatpush.msra.mxu0 0.0
  %296 = vmatpush.msra.mxu0 0.0
  %297 = vmatpush.msra.mxu0 0.0
  %298 = vmatpush.msra.mxu0 0.0
  %299 = vmatpush.msra.mxu0 0.0
  %300 = vmatpush.msra.mxu0 0.0
  %301 = vmatpush.msra.mxu0 0.0
  %302 = vmatpush.msra.mxu0 0.0
  %303 = vmatpush.msra.mxu0 0.0
  %304 = vmatpush.msra.mxu0 %v160
  %305 = vmatmul.f32.gmra.mxu0 %v249
  %v306 = vpop.f32.mrf.mxu0
  %v307 = vadd.f32 %v237, %v306
  %308 = vmatmul.f32.gmra.mxu0 %v252
  %v309 = vpop.f32.mrf.mxu0
  %v310 = vadd.f32 %v240, %v309
  %311 = vmatmul.f32.gmra.mxu0 %v255
  %v312 = vpop.f32.mrf.mxu0
  %v313 = vadd.f32 %v243, %v312
  %314 = vmatmul.f32.gmra.mxu0 %v258
  %v315 = vpop.f32.mrf.mxu0
  %v316 = vadd.f32 %v246, %v315
  %317 = vdwg.mxu0
  %s318 = scalar_lea.vmem %s4, 64
  %v319 = vld [vmem:[%s318] sm:$0xff]
  %v320 = vld [vmem:[%s318 + $0x8] sm:$0xff]
  %v321 = vld [vmem:[%s318 + $0x10] sm:$0xff]
  %v322 = vld [vmem:[%s318 + $0x18] sm:$0xff]
  %323 = vrot.lane.b32.xlu0 %v159, 124
  %v324 = vpop.permute.xlu0 %323
  %325 = vrot.lane.b32.xlu0 %v160, 124
  %v326 = vpop.permute.xlu0 %325
  %vm327 = vcmp.lt.s32.totalorder %v137, 124
  %v328 = vsel %vm327, %v324, %v326
  %v329 = vsel %vm327, %v326, %v324
  %v331 = vsel %vm177, %v319, 0
  %v334 = vsel %vm177, %v320, 0
  %v337 = vsel %vm177, %v321, 0
  %v340 = vsel %vm177, %v322, 0
  %342 = vmatpush.msra.mxu0 0.0
  %343 = vmatpush.msra.mxu0 0.0
  %344 = vmatpush.msra.mxu0 0.0
  %345 = vmatpush.msra.mxu0 0.0
  %346 = vmatpush.msra.mxu0 0.0
  %347 = vmatpush.msra.mxu0 0.0
  %348 = vmatpush.msra.mxu0 0.0
  %349 = vmatpush.msra.mxu0 0.0
  %350 = vmatpush.msra.mxu0 0.0
  %351 = vmatpush.msra.mxu0 0.0
  %352 = vmatpush.msra.mxu0 0.0
  %353 = vmatpush.msra.mxu0 0.0
  %354 = vmatpush.msra.mxu0 0.0
  %355 = vmatpush.msra.mxu0 0.0
  %356 = vmatpush.msra.mxu0 0.0
  %357 = vmatpush.msra.mxu0 %v328
  %358 = vmatmul.f32.gmra.mxu0 %v331
  %v359 = vpop.f32.mrf.mxu0
  %v360 = vadd.f32 0.0, %v359
  %361 = vmatmul.f32.gmra.mxu0 %v334
  %v362 = vpop.f32.mrf.mxu0
  %v363 = vadd.f32 0.0, %v362
  %364 = vmatmul.f32.gmra.mxu0 %v337
  %v365 = vpop.f32.mrf.mxu0
  %v366 = vadd.f32 0.0, %v365
  %367 = vmatmul.f32.gmra.mxu0 %v340
  %v368 = vpop.f32.mrf.mxu0
  %v369 = vadd.f32 0.0, %v368
  %370 = vdwg.mxu0
  %371 = vmatpush.msra.mxu0 0.0
  %372 = vmatpush.msra.mxu0 0.0
  %373 = vmatpush.msra.mxu0 0.0
  %374 = vmatpush.msra.mxu0 0.0
  %375 = vmatpush.msra.mxu0 0.0
  %376 = vmatpush.msra.mxu0 0.0
  %377 = vmatpush.msra.mxu0 0.0
  %378 = vmatpush.msra.mxu0 0.0
  %379 = vmatpush.msra.mxu0 0.0
  %380 = vmatpush.msra.mxu0 0.0
  %381 = vmatpush.msra.mxu0 0.0
  %382 = vmatpush.msra.mxu0 0.0
  %383 = vmatpush.msra.mxu0 0.0
  %384 = vmatpush.msra.mxu0 0.0
  %385 = vmatpush.msra.mxu0 0.0
  %386 = vmatpush.msra.mxu0 %v329
  %387 = vmatmul.f32.gmra.mxu0 %v331
  %v388 = vpop.f32.mrf.mxu0
  %v389 = vadd.f32 0.0, %v388
  %390 = vmatmul.f32.gmra.mxu0 %v334
  %v391 = vpop.f32.mrf.mxu0
  %v392 = vadd.f32 0.0, %v391
  %393 = vmatmul.f32.gmra.mxu0 %v337
  %v394 = vpop.f32.mrf.mxu0
  %v395 = vadd.f32 0.0, %v394
  %396 = vmatmul.f32.gmra.mxu0 %v340
  %v397 = vpop.f32.mrf.mxu0
  %v398 = vadd.f32 0.0, %v397
  %399 = vdwg.mxu0
  %v400 = vadd.f32 %v278, %v360
  %v401 = vadd.f32 %v307, %v389
  %v402 = vadd.f32 %v281, %v363
  %v403 = vadd.f32 %v310, %v392
  %v404 = vadd.f32 %v284, %v366
  %v405 = vadd.f32 %v313, %v395
  %v406 = vadd.f32 %v287, %v369
  %v407 = vadd.f32 %v316, %v398
  %s408 = scalar_lea.vmem %s4, 96
  %v409 = vld [vmem:[%s408] sm:$0xff]
  %v410 = vld [vmem:[%s408 + $0x8] sm:$0xff]
  %v411 = vld [vmem:[%s408 + $0x10] sm:$0xff]
  %v412 = vld [vmem:[%s408 + $0x18] sm:$0xff]
  %413 = vrot.lane.b32.xlu0 %v159, 106
  %v414 = vpop.permute.xlu0 %413
  %415 = vrot.lane.b32.xlu0 %v160, 106
  %v416 = vpop.permute.xlu0 %415
  %vm417 = vcmp.lt.s32.totalorder %v137, 106
  %v418 = vsel %vm417, %v414, %v416
  %v419 = vsel %vm417, %v416, %v414
  %v421 = vsel %vm177, %v409, 0
  %v424 = vsel %vm177, %v410, 0
  %v427 = vsel %vm177, %v411, 0
  %v430 = vsel %vm177, %v412, 0
  %432 = vmatpush.msra.mxu0 0.0
  %433 = vmatpush.msra.mxu0 0.0
  %434 = vmatpush.msra.mxu0 0.0
  %435 = vmatpush.msra.mxu0 0.0
  %436 = vmatpush.msra.mxu0 0.0
  %437 = vmatpush.msra.mxu0 0.0
  %438 = vmatpush.msra.mxu0 0.0
  %439 = vmatpush.msra.mxu0 0.0
  %440 = vmatpush.msra.mxu0 0.0
  %441 = vmatpush.msra.mxu0 0.0
  %442 = vmatpush.msra.mxu0 0.0
  %443 = vmatpush.msra.mxu0 0.0
  %444 = vmatpush.msra.mxu0 0.0
  %445 = vmatpush.msra.mxu0 0.0
  %446 = vmatpush.msra.mxu0 0.0
  %447 = vmatpush.msra.mxu0 %v418
  %448 = vmatmul.f32.gmra.mxu0 %v421
  %v449 = vpop.f32.mrf.mxu0
  %v450 = vadd.f32 0.0, %v449
  %451 = vmatmul.f32.gmra.mxu0 %v424
  %v452 = vpop.f32.mrf.mxu0
  %v453 = vadd.f32 0.0, %v452
  %454 = vmatmul.f32.gmra.mxu0 %v427
  %v455 = vpop.f32.mrf.mxu0
  %v456 = vadd.f32 0.0, %v455
  %457 = vmatmul.f32.gmra.mxu0 %v430
  %v458 = vpop.f32.mrf.mxu0
  %v459 = vadd.f32 0.0, %v458
  %460 = vdwg.mxu0
  %461 = vmatpush.msra.mxu0 0.0
  %462 = vmatpush.msra.mxu0 0.0
  %463 = vmatpush.msra.mxu0 0.0
  %464 = vmatpush.msra.mxu0 0.0
  %465 = vmatpush.msra.mxu0 0.0
  %466 = vmatpush.msra.mxu0 0.0
  %467 = vmatpush.msra.mxu0 0.0
  %468 = vmatpush.msra.mxu0 0.0
  %469 = vmatpush.msra.mxu0 0.0
  %470 = vmatpush.msra.mxu0 0.0
  %471 = vmatpush.msra.mxu0 0.0
  %472 = vmatpush.msra.mxu0 0.0
  %473 = vmatpush.msra.mxu0 0.0
  %474 = vmatpush.msra.mxu0 0.0
  %475 = vmatpush.msra.mxu0 0.0
  %476 = vmatpush.msra.mxu0 %v419
  %477 = vmatmul.f32.gmra.mxu0 %v421
  %v478 = vpop.f32.mrf.mxu0
  %v479 = vadd.f32 0.0, %v478
  %480 = vmatmul.f32.gmra.mxu0 %v424
  %v481 = vpop.f32.mrf.mxu0
  %v482 = vadd.f32 0.0, %v481
  %483 = vmatmul.f32.gmra.mxu0 %v427
  %v484 = vpop.f32.mrf.mxu0
  %v485 = vadd.f32 0.0, %v484
  %486 = vmatmul.f32.gmra.mxu0 %v430
  %v487 = vpop.f32.mrf.mxu0
  %v488 = vadd.f32 0.0, %v487
  %489 = vdwg.mxu0
  %v490 = vadd.f32 %v400, %v450
  %v491 = vadd.f32 %v401, %v479
  %v492 = vadd.f32 %v402, %v453
  %v493 = vadd.f32 %v403, %v482
  %v494 = vadd.f32 %v404, %v456
  %v495 = vadd.f32 %v405, %v485
  %v496 = vadd.f32 %v406, %v459
  %v497 = vadd.f32 %v407, %v488
  %s498 = scalar_lea.vmem %s4, 128
  %v499 = vld [vmem:[%s498] sm:$0xff]
  %v500 = vld [vmem:[%s498 + $0x8] sm:$0xff]
  %v501 = vld [vmem:[%s498 + $0x10] sm:$0xff]
  %v502 = vld [vmem:[%s498 + $0x18] sm:$0xff]
  %503 = vrot.lane.b32.xlu0 %v159, 104
  %v504 = vpop.permute.xlu0 %503
  %505 = vrot.lane.b32.xlu0 %v160, 104
  %v506 = vpop.permute.xlu0 %505
  %vm507 = vcmp.lt.s32.totalorder %v137, 104
  %v508 = vsel %vm507, %v504, %v506
  %v509 = vsel %vm507, %v506, %v504
  %v511 = vsel %vm177, %v499, 0
  %v514 = vsel %vm177, %v500, 0
  %v517 = vsel %vm177, %v501, 0
  %v520 = vsel %vm177, %v502, 0
  %522 = vmatpush.msra.mxu0 0.0
  %523 = vmatpush.msra.mxu0 0.0
  %524 = vmatpush.msra.mxu0 0.0
  %525 = vmatpush.msra.mxu0 0.0
  %526 = vmatpush.msra.mxu0 0.0
  %527 = vmatpush.msra.mxu0 0.0
  %528 = vmatpush.msra.mxu0 0.0
  %529 = vmatpush.msra.mxu0 0.0
  %530 = vmatpush.msra.mxu0 0.0
  %531 = vmatpush.msra.mxu0 0.0
  %532 = vmatpush.msra.mxu0 0.0
  %533 = vmatpush.msra.mxu0 0.0
  %534 = vmatpush.msra.mxu0 0.0
  %535 = vmatpush.msra.mxu0 0.0
  %536 = vmatpush.msra.mxu0 0.0
  %537 = vmatpush.msra.mxu0 %v508
  %538 = vmatmul.f32.gmra.mxu0 %v511
  %v539 = vpop.f32.mrf.mxu0
  %v540 = vadd.f32 0.0, %v539
  %541 = vmatmul.f32.gmra.mxu0 %v514
  %v542 = vpop.f32.mrf.mxu0
  %v543 = vadd.f32 0.0, %v542
  %544 = vmatmul.f32.gmra.mxu0 %v517
  %v545 = vpop.f32.mrf.mxu0
  %v546 = vadd.f32 0.0, %v545
  %547 = vmatmul.f32.gmra.mxu0 %v520
  %v548 = vpop.f32.mrf.mxu0
  %v549 = vadd.f32 0.0, %v548
  %550 = vdwg.mxu0
  %551 = vmatpush.msra.mxu0 0.0
  %552 = vmatpush.msra.mxu0 0.0
  %553 = vmatpush.msra.mxu0 0.0
  %554 = vmatpush.msra.mxu0 0.0
  %555 = vmatpush.msra.mxu0 0.0
  %556 = vmatpush.msra.mxu0 0.0
  %557 = vmatpush.msra.mxu0 0.0
  %558 = vmatpush.msra.mxu0 0.0
  %559 = vmatpush.msra.mxu0 0.0
  %560 = vmatpush.msra.mxu0 0.0
  %561 = vmatpush.msra.mxu0 0.0
  %562 = vmatpush.msra.mxu0 0.0
  %563 = vmatpush.msra.mxu0 0.0
  %564 = vmatpush.msra.mxu0 0.0
  %565 = vmatpush.msra.mxu0 0.0
  %566 = vmatpush.msra.mxu0 %v509
  %567 = vmatmul.f32.gmra.mxu0 %v511
  %v568 = vpop.f32.mrf.mxu0
  %v569 = vadd.f32 0.0, %v568
  %570 = vmatmul.f32.gmra.mxu0 %v514
  %v571 = vpop.f32.mrf.mxu0
  %v572 = vadd.f32 0.0, %v571
  %573 = vmatmul.f32.gmra.mxu0 %v517
  %v574 = vpop.f32.mrf.mxu0
  %v575 = vadd.f32 0.0, %v574
  %576 = vmatmul.f32.gmra.mxu0 %v520
  %v577 = vpop.f32.mrf.mxu0
  %v578 = vadd.f32 0.0, %v577
  %579 = vdwg.mxu0
  %v580 = vadd.f32 %v490, %v540
  %v581 = vadd.f32 %v491, %v569
  %v582 = vadd.f32 %v492, %v543
  %v583 = vadd.f32 %v493, %v572
  %v584 = vadd.f32 %v494, %v546
  %v585 = vadd.f32 %v495, %v575
  %v586 = vadd.f32 %v496, %v549
  %v587 = vadd.f32 %v497, %v578
  %s588 = scalar_lea.vmem %s4, 160
  %v589 = vld [vmem:[%s588] sm:$0xff]
  %v590 = vld [vmem:[%s588 + $0x8] sm:$0xff]
  %v591 = vld [vmem:[%s588 + $0x10] sm:$0xff]
  %v592 = vld [vmem:[%s588 + $0x18] sm:$0xff]
  %593 = vrot.lane.b32.xlu0 %v159, 102
  %v594 = vpop.permute.xlu0 %593
  %595 = vrot.lane.b32.xlu0 %v160, 102
  %v596 = vpop.permute.xlu0 %595
  %vm597 = vcmp.lt.s32.totalorder %v137, 102
  %v598 = vsel %vm597, %v594, %v596
  %v599 = vsel %vm597, %v596, %v594
  %v601 = vsel %vm177, %v589, 0
  %v604 = vsel %vm177, %v590, 0
  %v607 = vsel %vm177, %v591, 0
  %v610 = vsel %vm177, %v592, 0
  %612 = vmatpush.msra.mxu0 0.0
  %613 = vmatpush.msra.mxu0 0.0
  %614 = vmatpush.msra.mxu0 0.0
  %615 = vmatpush.msra.mxu0 0.0
  %616 = vmatpush.msra.mxu0 0.0
  %617 = vmatpush.msra.mxu0 0.0
  %618 = vmatpush.msra.mxu0 0.0
  %619 = vmatpush.msra.mxu0 0.0
  %620 = vmatpush.msra.mxu0 0.0
  %621 = vmatpush.msra.mxu0 0.0
  %622 = vmatpush.msra.mxu0 0.0
  %623 = vmatpush.msra.mxu0 0.0
  %624 = vmatpush.msra.mxu0 0.0
  %625 = vmatpush.msra.mxu0 0.0
  %626 = vmatpush.msra.mxu0 0.0
  %627 = vmatpush.msra.mxu0 %v598
  %628 = vmatmul.f32.gmra.mxu0 %v601
  %v629 = vpop.f32.mrf.mxu0
  %v630 = vadd.f32 0.0, %v629
  %631 = vmatmul.f32.gmra.mxu0 %v604
  %v632 = vpop.f32.mrf.mxu0
  %v633 = vadd.f32 0.0, %v632
  %634 = vmatmul.f32.gmra.mxu0 %v607
  %v635 = vpop.f32.mrf.mxu0
  %v636 = vadd.f32 0.0, %v635
  %637 = vmatmul.f32.gmra.mxu0 %v610
  %v638 = vpop.f32.mrf.mxu0
  %v639 = vadd.f32 0.0, %v638
  %640 = vdwg.mxu0
  %641 = vmatpush.msra.mxu0 0.0
  %642 = vmatpush.msra.mxu0 0.0
  %643 = vmatpush.msra.mxu0 0.0
  %644 = vmatpush.msra.mxu0 0.0
  %645 = vmatpush.msra.mxu0 0.0
  %646 = vmatpush.msra.mxu0 0.0
  %647 = vmatpush.msra.mxu0 0.0
  %648 = vmatpush.msra.mxu0 0.0
  %649 = vmatpush.msra.mxu0 0.0
  %650 = vmatpush.msra.mxu0 0.0
  %651 = vmatpush.msra.mxu0 0.0
  %652 = vmatpush.msra.mxu0 0.0
  %653 = vmatpush.msra.mxu0 0.0
  %654 = vmatpush.msra.mxu0 0.0
  %655 = vmatpush.msra.mxu0 0.0
  %656 = vmatpush.msra.mxu0 %v599
  %657 = vmatmul.f32.gmra.mxu0 %v601
  %v658 = vpop.f32.mrf.mxu0
  %v659 = vadd.f32 0.0, %v658
  %660 = vmatmul.f32.gmra.mxu0 %v604
  %v661 = vpop.f32.mrf.mxu0
  %v662 = vadd.f32 0.0, %v661
  %663 = vmatmul.f32.gmra.mxu0 %v607
  %v664 = vpop.f32.mrf.mxu0
  %v665 = vadd.f32 0.0, %v664
  %666 = vmatmul.f32.gmra.mxu0 %v610
  %v667 = vpop.f32.mrf.mxu0
  %v668 = vadd.f32 0.0, %v667
  %669 = vdwg.mxu0
  %v670 = vadd.f32 %v580, %v630
  %v671 = vadd.f32 %v581, %v659
  %v672 = vadd.f32 %v582, %v633
  %v673 = vadd.f32 %v583, %v662
  %v674 = vadd.f32 %v584, %v636
  %v675 = vadd.f32 %v585, %v665
  %v676 = vadd.f32 %v586, %v639
  %v677 = vadd.f32 %v587, %v668
  %s678 = scalar_lea.vmem %s4, 192
  %v679 = vld [vmem:[%s678] sm:$0xff]
  %v680 = vld [vmem:[%s678 + $0x8] sm:$0xff]
  %v681 = vld [vmem:[%s678 + $0x10] sm:$0xff]
  %v682 = vld [vmem:[%s678 + $0x18] sm:$0xff]
  %683 = vrot.lane.b32.xlu0 %v159, 84
  %v684 = vpop.permute.xlu0 %683
  %685 = vrot.lane.b32.xlu0 %v160, 84
  %v686 = vpop.permute.xlu0 %685
  %vm687 = vcmp.lt.s32.totalorder %v137, 84
  %v688 = vsel %vm687, %v684, %v686
  %v689 = vsel %vm687, %v686, %v684
  %v691 = vsel %vm177, %v679, 0
  %v694 = vsel %vm177, %v680, 0
  %v697 = vsel %vm177, %v681, 0
  %v700 = vsel %vm177, %v682, 0
  %702 = vmatpush.msra.mxu0 0.0
  %703 = vmatpush.msra.mxu0 0.0
  %704 = vmatpush.msra.mxu0 0.0
  %705 = vmatpush.msra.mxu0 0.0
  %706 = vmatpush.msra.mxu0 0.0
  %707 = vmatpush.msra.mxu0 0.0
  %708 = vmatpush.msra.mxu0 0.0
  %709 = vmatpush.msra.mxu0 0.0
  %710 = vmatpush.msra.mxu0 0.0
  %711 = vmatpush.msra.mxu0 0.0
  %712 = vmatpush.msra.mxu0 0.0
  %713 = vmatpush.msra.mxu0 0.0
  %714 = vmatpush.msra.mxu0 0.0
  %715 = vmatpush.msra.mxu0 0.0
  %716 = vmatpush.msra.mxu0 0.0
  %717 = vmatpush.msra.mxu0 %v688
  %718 = vmatmul.f32.gmra.mxu0 %v691
  %v719 = vpop.f32.mrf.mxu0
  %v720 = vadd.f32 0.0, %v719
  %721 = vmatmul.f32.gmra.mxu0 %v694
  %v722 = vpop.f32.mrf.mxu0
  %v723 = vadd.f32 0.0, %v722
  %724 = vmatmul.f32.gmra.mxu0 %v697
  %v725 = vpop.f32.mrf.mxu0
  %v726 = vadd.f32 0.0, %v725
  %727 = vmatmul.f32.gmra.mxu0 %v700
  %v728 = vpop.f32.mrf.mxu0
  %v729 = vadd.f32 0.0, %v728
  %730 = vdwg.mxu0
  %731 = vmatpush.msra.mxu0 0.0
  %732 = vmatpush.msra.mxu0 0.0
  %733 = vmatpush.msra.mxu0 0.0
  %734 = vmatpush.msra.mxu0 0.0
  %735 = vmatpush.msra.mxu0 0.0
  %736 = vmatpush.msra.mxu0 0.0
  %737 = vmatpush.msra.mxu0 0.0
  %738 = vmatpush.msra.mxu0 0.0
  %739 = vmatpush.msra.mxu0 0.0
  %740 = vmatpush.msra.mxu0 0.0
  %741 = vmatpush.msra.mxu0 0.0
  %742 = vmatpush.msra.mxu0 0.0
  %743 = vmatpush.msra.mxu0 0.0
  %744 = vmatpush.msra.mxu0 0.0
  %745 = vmatpush.msra.mxu0 0.0
  %746 = vmatpush.msra.mxu0 %v689
  %747 = vmatmul.f32.gmra.mxu0 %v691
  %v748 = vpop.f32.mrf.mxu0
  %v749 = vadd.f32 0.0, %v748
  %750 = vmatmul.f32.gmra.mxu0 %v694
  %v751 = vpop.f32.mrf.mxu0
  %v752 = vadd.f32 0.0, %v751
  %753 = vmatmul.f32.gmra.mxu0 %v697
  %v754 = vpop.f32.mrf.mxu0
  %v755 = vadd.f32 0.0, %v754
  %756 = vmatmul.f32.gmra.mxu0 %v700
  %v757 = vpop.f32.mrf.mxu0
  %v758 = vadd.f32 0.0, %v757
  %759 = vdwg.mxu0
  %v760 = vadd.f32 %v670, %v720
  %v761 = vadd.f32 %v671, %v749
  %v762 = vadd.f32 %v672, %v723
  %v763 = vadd.f32 %v673, %v752
  %v764 = vadd.f32 %v674, %v726
  %v765 = vadd.f32 %v675, %v755
  %v766 = vadd.f32 %v676, %v729
  %v767 = vadd.f32 %v677, %v758
  %s768 = scalar_lea.vmem %s4, 224
  %v769 = vld [vmem:[%s768] sm:$0xff]
  %v770 = vld [vmem:[%s768 + $0x8] sm:$0xff]
  %v771 = vld [vmem:[%s768 + $0x10] sm:$0xff]
  %v772 = vld [vmem:[%s768 + $0x18] sm:$0xff]
  %773 = vrot.lane.b32.xlu0 %v159, 82
  %v774 = vpop.permute.xlu0 %773
  %775 = vrot.lane.b32.xlu0 %v160, 82
  %v776 = vpop.permute.xlu0 %775
  %vm777 = vcmp.lt.s32.totalorder %v137, 82
  %v778 = vsel %vm777, %v774, %v776
  %v779 = vsel %vm777, %v776, %v774
  %v781 = vsel %vm177, %v769, 0
  %v784 = vsel %vm177, %v770, 0
  %v787 = vsel %vm177, %v771, 0
  %v790 = vsel %vm177, %v772, 0
  %792 = vmatpush.msra.mxu0 0.0
  %793 = vmatpush.msra.mxu0 0.0
  %794 = vmatpush.msra.mxu0 0.0
  %795 = vmatpush.msra.mxu0 0.0
  %796 = vmatpush.msra.mxu0 0.0
  %797 = vmatpush.msra.mxu0 0.0
  %798 = vmatpush.msra.mxu0 0.0
  %799 = vmatpush.msra.mxu0 0.0
  %800 = vmatpush.msra.mxu0 0.0
  %801 = vmatpush.msra.mxu0 0.0
  %802 = vmatpush.msra.mxu0 0.0
  %803 = vmatpush.msra.mxu0 0.0
  %804 = vmatpush.msra.mxu0 0.0
  %805 = vmatpush.msra.mxu0 0.0
  %806 = vmatpush.msra.mxu0 0.0
  %807 = vmatpush.msra.mxu0 %v778
  %808 = vmatmul.f32.gmra.mxu0 %v781
  %v809 = vpop.f32.mrf.mxu0
  %v810 = vadd.f32 0.0, %v809
  %811 = vmatmul.f32.gmra.mxu0 %v784
  %v812 = vpop.f32.mrf.mxu0
  %v813 = vadd.f32 0.0, %v812
  %814 = vmatmul.f32.gmra.mxu0 %v787
  %v815 = vpop.f32.mrf.mxu0
  %v816 = vadd.f32 0.0, %v815
  %817 = vmatmul.f32.gmra.mxu0 %v790
  %v818 = vpop.f32.mrf.mxu0
  %v819 = vadd.f32 0.0, %v818
  %820 = vdwg.mxu0
  %821 = vmatpush.msra.mxu0 0.0
  %822 = vmatpush.msra.mxu0 0.0
  %823 = vmatpush.msra.mxu0 0.0
  %824 = vmatpush.msra.mxu0 0.0
  %825 = vmatpush.msra.mxu0 0.0
  %826 = vmatpush.msra.mxu0 0.0
  %827 = vmatpush.msra.mxu0 0.0
  %828 = vmatpush.msra.mxu0 0.0
  %829 = vmatpush.msra.mxu0 0.0
  %830 = vmatpush.msra.mxu0 0.0
  %831 = vmatpush.msra.mxu0 0.0
  %832 = vmatpush.msra.mxu0 0.0
  %833 = vmatpush.msra.mxu0 0.0
  %834 = vmatpush.msra.mxu0 0.0
  %835 = vmatpush.msra.mxu0 0.0
  %836 = vmatpush.msra.mxu0 %v779
  %837 = vmatmul.f32.gmra.mxu0 %v781
  %v838 = vpop.f32.mrf.mxu0
  %v839 = vadd.f32 0.0, %v838
  %840 = vmatmul.f32.gmra.mxu0 %v784
  %v841 = vpop.f32.mrf.mxu0
  %v842 = vadd.f32 0.0, %v841
  %843 = vmatmul.f32.gmra.mxu0 %v787
  %v844 = vpop.f32.mrf.mxu0
  %v845 = vadd.f32 0.0, %v844
  %846 = vmatmul.f32.gmra.mxu0 %v790
  %v847 = vpop.f32.mrf.mxu0
  %v848 = vadd.f32 0.0, %v847
  %849 = vdwg.mxu0
  %v850 = vadd.f32 %v760, %v810
  %v851 = vadd.f32 %v761, %v839
  %v852 = vadd.f32 %v762, %v813
  %v853 = vadd.f32 %v763, %v842
  %v854 = vadd.f32 %v764, %v816
  %v855 = vadd.f32 %v765, %v845
  %v856 = vadd.f32 %v766, %v819
  %v857 = vadd.f32 %v767, %v848
  %s858 = scalar_lea.vmem %s4, 256
  %v859 = vld [vmem:[%s858] sm:$0xff]
  %v860 = vld [vmem:[%s858 + $0x8] sm:$0xff]
  %v861 = vld [vmem:[%s858 + $0x10] sm:$0xff]
  %v862 = vld [vmem:[%s858 + $0x18] sm:$0xff]
  %863 = vrot.lane.b32.xlu0 %v159, 80
  %v864 = vpop.permute.xlu0 %863
  %865 = vrot.lane.b32.xlu0 %v160, 80
  %v866 = vpop.permute.xlu0 %865
  %vm867 = vcmp.lt.s32.totalorder %v137, 80
  %v868 = vsel %vm867, %v864, %v866
  %v869 = vsel %vm867, %v866, %v864
  %v871 = vsel %vm177, %v859, 0
  %v874 = vsel %vm177, %v860, 0
  %v877 = vsel %vm177, %v861, 0
  %v880 = vsel %vm177, %v862, 0
  %882 = vmatpush.msra.mxu0 0.0
  %883 = vmatpush.msra.mxu0 0.0
  %884 = vmatpush.msra.mxu0 0.0
  %885 = vmatpush.msra.mxu0 0.0
  %886 = vmatpush.msra.mxu0 0.0
  %887 = vmatpush.msra.mxu0 0.0
  %888 = vmatpush.msra.mxu0 0.0
  %889 = vmatpush.msra.mxu0 0.0
  %890 = vmatpush.msra.mxu0 0.0
  %891 = vmatpush.msra.mxu0 0.0
  %892 = vmatpush.msra.mxu0 0.0
  %893 = vmatpush.msra.mxu0 0.0
  %894 = vmatpush.msra.mxu0 0.0
  %895 = vmatpush.msra.mxu0 0.0
  %896 = vmatpush.msra.mxu0 0.0
  %897 = vmatpush.msra.mxu0 %v868
  %898 = vmatmul.f32.gmra.mxu0 %v871
  %v899 = vpop.f32.mrf.mxu0
  %v900 = vadd.f32 0.0, %v899
  %901 = vmatmul.f32.gmra.mxu0 %v874
  %v902 = vpop.f32.mrf.mxu0
  %v903 = vadd.f32 0.0, %v902
  %904 = vmatmul.f32.gmra.mxu0 %v877
  %v905 = vpop.f32.mrf.mxu0
  %v906 = vadd.f32 0.0, %v905
  %907 = vmatmul.f32.gmra.mxu0 %v880
  %v908 = vpop.f32.mrf.mxu0
  %v909 = vadd.f32 0.0, %v908
  %910 = vdwg.mxu0
  %911 = vmatpush.msra.mxu0 0.0
  %912 = vmatpush.msra.mxu0 0.0
  %913 = vmatpush.msra.mxu0 0.0
  %914 = vmatpush.msra.mxu0 0.0
  %915 = vmatpush.msra.mxu0 0.0
  %916 = vmatpush.msra.mxu0 0.0
  %917 = vmatpush.msra.mxu0 0.0
  %918 = vmatpush.msra.mxu0 0.0
  %919 = vmatpush.msra.mxu0 0.0
  %920 = vmatpush.msra.mxu0 0.0
  %921 = vmatpush.msra.mxu0 0.0
  %922 = vmatpush.msra.mxu0 0.0
  %923 = vmatpush.msra.mxu0 0.0
  %924 = vmatpush.msra.mxu0 0.0
  %925 = vmatpush.msra.mxu0 0.0
  %926 = vmatpush.msra.mxu0 %v869
  %927 = vmatmul.f32.gmra.mxu0 %v871
  %v928 = vpop.f32.mrf.mxu0
  %v929 = vadd.f32 0.0, %v928
  %930 = vmatmul.f32.gmra.mxu0 %v874
  %v931 = vpop.f32.mrf.mxu0
  %v932 = vadd.f32 0.0, %v931
  %933 = vmatmul.f32.gmra.mxu0 %v877
  %v934 = vpop.f32.mrf.mxu0
  %v935 = vadd.f32 0.0, %v934
  %936 = vmatmul.f32.gmra.mxu0 %v880
  %v937 = vpop.f32.mrf.mxu0
  %v938 = vadd.f32 0.0, %v937
  %939 = vdwg.mxu0
  %v940 = vadd.f32 %v850, %v900
  %v941 = vadd.f32 %v851, %v929
  %v942 = vadd.f32 %v852, %v903
  %v943 = vadd.f32 %v853, %v932
  %v944 = vadd.f32 %v854, %v906
  %v945 = vadd.f32 %v855, %v935
  %v946 = vadd.f32 %v856, %v909
  %v947 = vadd.f32 %v857, %v938
  %v948 = vadd.s32 %v137, 128
  %v949 = vand.u32 %v137, 127
  %v950 = vand.u32 %v948, 127
  %vm951 = vcmp.eq.s32.totalorder %v949, 0
  %vm952 = vcmp.eq.s32.totalorder %v950, 0
  %vm953 = vcmp.eq.s32.totalorder %v949, 2
  %vm954 = vcmp.eq.s32.totalorder %v950, 2
  %vm955 = vcmp.eq.s32.totalorder %v949, 4
  %vm956 = vcmp.eq.s32.totalorder %v950, 4
  %vm957 = vcmp.eq.s32.totalorder %v949, 22
  %vm958 = vcmp.eq.s32.totalorder %v950, 22
  %vm959 = vcmp.eq.s32.totalorder %v949, 24
  %vm960 = vcmp.eq.s32.totalorder %v950, 24
  %vm961 = vcmp.eq.s32.totalorder %v949, 26
  %vm962 = vcmp.eq.s32.totalorder %v950, 26
  %vm963 = vcmp.eq.s32.totalorder %v949, 44
  %vm964 = vcmp.eq.s32.totalorder %v950, 44
  %vm965 = vcmp.eq.s32.totalorder %v949, 46
  %vm966 = vcmp.eq.s32.totalorder %v950, 46
  %vm967 = vcmp.eq.s32.totalorder %v949, 48
  %vm968 = vcmp.eq.s32.totalorder %v950, 48
  %vm969 = vmor %vm951, %vm953
  %vm970 = vmor %vm952, %vm954
  %vm971 = vmor %vm969, %vm955
  %vm972 = vmor %vm970, %vm956
  %vm973 = vmor %vm971, %vm957
  %vm974 = vmor %vm972, %vm958
  %vm975 = vmor %vm973, %vm959
  %vm976 = vmor %vm974, %vm960
  %vm977 = vmor %vm975, %vm961
  %vm978 = vmor %vm976, %vm962
  %vm979 = vmor %vm977, %vm963
  %vm980 = vmor %vm978, %vm964
  %vm981 = vmor %vm979, %vm965
  %vm982 = vmor %vm980, %vm966
  %vm983 = vmor %vm981, %vm967
  %vm984 = vmor %vm982, %vm968
  %v985 = vsel %vm983, 1, 0
  %v986 = vsel %vm984, 1, 0
  %v987 = vcvt.s32.f32 %v985
  %v988 = vcvt.s32.f32 %v986
  %v989 = vld [vmem:[%s5] sm:$0xff]
  %v990 = vld [vmem:[%s5 + $0x8] sm:$0xff]
  %v991 = vld [vmem:[%s5 + $0x10] sm:$0xff]
  %v992 = vld [vmem:[%s5 + $0x18] sm:$0xff]
  %v993 = vld [vmem:[%s6] sm:$0xff]
  %v994 = vld [vmem:[%s6 + $0x8] sm:$0xff]
  %v995 = vld [vmem:[%s6 + $0x10] sm:$0xff]
  %v996 = vld [vmem:[%s6 + $0x18] sm:$0xff]
  %v997 = vmul.f32 %v940, %v987
  %v998 = vmul.f32 %v941, %v988
  %v999 = vmul.f32 %v942, %v987
  %v1000 = vmul.f32 %v943, %v988
  %v1001 = vmul.f32 %v944, %v987
  %v1002 = vmul.f32 %v945, %v988
  %v1003 = vmul.f32 %v946, %v987
  %v1004 = vmul.f32 %v947, %v988
  %v1005 = vadd.f32 %v997, %v998
  %1006 = vadd.xlane.f32.xlu0 %v1005
  %v1007 = vpop.xlane.xlu0 %1006
  %v1008 = vadd.f32 %v999, %v1000
  %1009 = vadd.xlane.f32.xlu0 %v1008
  %v1010 = vpop.xlane.xlu0 %1009
  %v1011 = vadd.f32 %v1001, %v1002
  %1012 = vadd.xlane.f32.xlu0 %v1011
  %v1013 = vpop.xlane.xlu0 %1012
  %v1014 = vadd.f32 %v1003, %v1004
  %1015 = vadd.xlane.f32.xlu0 %v1014
  %v1016 = vpop.xlane.xlu0 %1015
  %v1017 = vmul.f32 %v1007, 0.055555556
  %v1018 = vmul.f32 %v1010, 0.055555556
  %v1019 = vmul.f32 %v1013, 0.055555556
  %v1020 = vmul.f32 %v1016, 0.055555556
  %v1021 = vmul.f32 %v997, %v940
  %v1022 = vmul.f32 %v998, %v941
  %v1023 = vmul.f32 %v999, %v942
  %v1024 = vmul.f32 %v1000, %v943
  %v1025 = vmul.f32 %v1001, %v944
  %v1026 = vmul.f32 %v1002, %v945
  %v1027 = vmul.f32 %v1003, %v946
  %v1028 = vmul.f32 %v1004, %v947
  %v1029 = vadd.f32 %v1021, %v1022
  %1030 = vadd.xlane.f32.xlu0 %v1029
  %v1031 = vpop.xlane.xlu0 %1030
  %v1032 = vadd.f32 %v1023, %v1024
  %1033 = vadd.xlane.f32.xlu0 %v1032
  %v1034 = vpop.xlane.xlu0 %1033
  %v1035 = vadd.f32 %v1025, %v1026
  %1036 = vadd.xlane.f32.xlu0 %v1035
  %v1037 = vpop.xlane.xlu0 %1036
  %v1038 = vadd.f32 %v1027, %v1028
  %1039 = vadd.xlane.f32.xlu0 %v1038
  %v1040 = vpop.xlane.xlu0 %1039
  %v1041 = vmul.f32 %v1031, 0.055555556
  %v1042 = vmul.f32 %v1034, 0.055555556
  %v1043 = vmul.f32 %v1037, 0.055555556
  %v1044 = vmul.f32 %v1040, 0.055555556
  %v1045 = vmul.f32 %v1017, %v1017
  %v1046 = vmul.f32 %v1018, %v1018
  %v1047 = vmul.f32 %v1019, %v1019
  %v1048 = vmul.f32 %v1020, %v1020
  %v1049 = vsub.f32 %v1041, %v1045
  %v1050 = vsub.f32 %v1042, %v1046
  %v1051 = vsub.f32 %v1043, %v1047
  %v1052 = vsub.f32 %v1044, %v1048
  %v1053 = vmax.f32 %v1049, 0.0
  %v1054 = vmax.f32 %v1050, 0.0
  %v1055 = vmax.f32 %v1051, 0.0
  %v1056 = vmax.f32 %v1052, 0.0
  %v1057 = vadd.f32 %v1053, 1e-05
  %v1058 = vadd.f32 %v1054, 1e-05
  %v1059 = vadd.f32 %v1055, 1e-05
  %v1060 = vadd.f32 %v1056, 1e-05
  %v1061 = vrsqrt.pop %v1057
  %v1062 = vmul.f32 %v1061, %v1057
  %v1063 = vmul.f32 %v1062, %v1061
  %v1064 = vmul.f32 0.5, %v1063
  %v1065 = vsub.f32 1.5, %v1064
  %v1066 = vmul.f32 %v1061, %v1065
  %vm1067 = vweird.f32 %v1057
  %vm1068 = vweird.f32 %v1061
  %vm1069 = vmor %vm1067, %vm1068
  %v1070 = vsel %vm1069, %v1061, %v1066
  %v1071 = vrsqrt.pop %v1058
  %v1072 = vmul.f32 %v1071, %v1058
  %v1073 = vmul.f32 %v1072, %v1071
  %v1074 = vmul.f32 0.5, %v1073
  %v1075 = vsub.f32 1.5, %v1074
  %v1076 = vmul.f32 %v1071, %v1075
  %vm1077 = vweird.f32 %v1058
  %vm1078 = vweird.f32 %v1071
  %vm1079 = vmor %vm1077, %vm1078
  %v1080 = vsel %vm1079, %v1071, %v1076
  %v1081 = vrsqrt.pop %v1059
  %v1082 = vmul.f32 %v1081, %v1059
  %v1083 = vmul.f32 %v1082, %v1081
  %v1084 = vmul.f32 0.5, %v1083
  %v1085 = vsub.f32 1.5, %v1084
  %v1086 = vmul.f32 %v1081, %v1085
  %vm1087 = vweird.f32 %v1059
  %vm1088 = vweird.f32 %v1081
  %vm1089 = vmor %vm1087, %vm1088
  %v1090 = vsel %vm1089, %v1081, %v1086
  %v1091 = vrsqrt.pop %v1060
  %v1092 = vmul.f32 %v1091, %v1060
  %v1093 = vmul.f32 %v1092, %v1091
  %v1094 = vmul.f32 0.5, %v1093
  %v1095 = vsub.f32 1.5, %v1094
  %v1096 = vmul.f32 %v1091, %v1095
  %vm1097 = vweird.f32 %v1060
  %vm1098 = vweird.f32 %v1091
  %vm1099 = vmor %vm1097, %vm1098
  %v1100 = vsel %vm1099, %v1091, %v1096
  %v1101 = vmul.f32 %v989, %v1070
  %v1102 = vmul.f32 %v990, %v1080
  %v1103 = vmul.f32 %v991, %v1090
  %v1104 = vmul.f32 %v992, %v1100
  %v1105 = vmul.f32 %v1017, %v1101
  %v1106 = vmul.f32 %v1018, %v1102
  %v1107 = vmul.f32 %v1019, %v1103
  %v1108 = vmul.f32 %v1020, %v1104
  %v1109 = vsub.f32 %v993, %v1105
  %v1110 = vsub.f32 %v994, %v1106
  %v1111 = vsub.f32 %v995, %v1107
  %v1112 = vsub.f32 %v996, %v1108
  %1114 = vset.pattern.permute.xlu0 0
  %1115 = vperm.xlu0 %1114, %v1101
  %v1116 = vpop.permute.xlu0 %1115
  %1119 = vset.pattern.permute.xlu0 0
  %1120 = vperm.xlu0 %1119, %v1102
  %v1121 = vpop.permute.xlu0 %1120
  %1124 = vset.pattern.permute.xlu0 0
  %1125 = vperm.xlu0 %1124, %v1103
  %v1126 = vpop.permute.xlu0 %1125
  %1129 = vset.pattern.permute.xlu0 0
  %1130 = vperm.xlu0 %1129, %v1104
  %v1131 = vpop.permute.xlu0 %1130
  %v1133 = vmul.f32 %v940, %v1116
  %v1134 = vmul.f32 %v941, %v1116
  %v1135 = vmul.f32 %v942, %v1121
  %v1136 = vmul.f32 %v943, %v1121
  %v1137 = vmul.f32 %v944, %v1126
  %v1138 = vmul.f32 %v945, %v1126
  %v1139 = vmul.f32 %v946, %v1131
  %v1140 = vmul.f32 %v947, %v1131
  %1142 = vset.pattern.permute.xlu0 0
  %1143 = vperm.xlu0 %1142, %v1109
  %v1144 = vpop.permute.xlu0 %1143
  %1147 = vset.pattern.permute.xlu0 0
  %1148 = vperm.xlu0 %1147, %v1110
  %v1149 = vpop.permute.xlu0 %1148
  %1152 = vset.pattern.permute.xlu0 0
  %1153 = vperm.xlu0 %1152, %v1111
  %v1154 = vpop.permute.xlu0 %1153
  %1157 = vset.pattern.permute.xlu0 0
  %1158 = vperm.xlu0 %1157, %v1112
  %v1159 = vpop.permute.xlu0 %1158
  %v1161 = vadd.f32 %v1133, %v1144
  %v1162 = vadd.f32 %v1134, %v1144
  %v1163 = vadd.f32 %v1135, %v1149
  %v1164 = vadd.f32 %v1136, %v1149
  %v1165 = vadd.f32 %v1137, %v1154
  %v1166 = vadd.f32 %v1138, %v1154
  %v1167 = vadd.f32 %v1139, %v1159
  %v1168 = vadd.f32 %v1140, %v1159
  %v1169 = vmax.f32 %v1161, 0.0
  %v1170 = vmax.f32 %v1162, 0.0
  %v1171 = vmax.f32 %v1163, 0.0
  %v1172 = vmax.f32 %v1164, 0.0
  %v1173 = vmax.f32 %v1165, 0.0
  %v1174 = vmax.f32 %v1166, 0.0
  %v1175 = vmax.f32 %v1167, 0.0
  %v1176 = vmax.f32 %v1168, 0.0
  %1177 = vrot.lane.b32.xlu0 %v1169, 126
  %v1178 = vpop.permute.xlu0 %1177
  %1179 = vrot.lane.b32.xlu0 %v1171, 126
  %v1180 = vpop.permute.xlu0 %1179
  %1181 = vrot.lane.b32.xlu0 %v1173, 126
  %v1182 = vpop.permute.xlu0 %1181
  %1183 = vrot.lane.b32.xlu0 %v1175, 126
  %v1184 = vpop.permute.xlu0 %1183
  %1185 = vrot.lane.b32.xlu0 %v1170, 126
  %v1186 = vpop.permute.xlu0 %1185
  %1187 = vrot.lane.b32.xlu0 %v1172, 126
  %v1188 = vpop.permute.xlu0 %1187
  %1189 = vrot.lane.b32.xlu0 %v1174, 126
  %v1190 = vpop.permute.xlu0 %1189
  %1191 = vrot.lane.b32.xlu0 %v1176, 126
  %v1192 = vpop.permute.xlu0 %1191
  %v1193 = vsel %vm174, %v1178, %v1186
  %v1194 = vsel %vm174, %v1180, %v1188
  %v1195 = vsel %vm174, %v1182, %v1190
  %v1196 = vsel %vm174, %v1184, %v1192
  %v1197 = vsel %vm174, %v1186, %v1178
  %v1198 = vsel %vm174, %v1188, %v1180
  %v1199 = vsel %vm174, %v1190, %v1182
  %v1200 = vsel %vm174, %v1192, %v1184
  %v1201 = vmax.f32 %v1169, %v1193
  %v1202 = vmax.f32 %v1170, %v1197
  %v1203 = vmax.f32 %v1171, %v1194
  %v1204 = vmax.f32 %v1172, %v1198
  %v1205 = vmax.f32 %v1173, %v1195
  %v1206 = vmax.f32 %v1174, %v1199
  %v1207 = vmax.f32 %v1175, %v1196
  %v1208 = vmax.f32 %v1176, %v1200
  %1209 = vrot.lane.b32.xlu0 %v1169, 106
  %v1210 = vpop.permute.xlu0 %1209
  %1211 = vrot.lane.b32.xlu0 %v1171, 106
  %v1212 = vpop.permute.xlu0 %1211
  %1213 = vrot.lane.b32.xlu0 %v1173, 106
  %v1214 = vpop.permute.xlu0 %1213
  %1215 = vrot.lane.b32.xlu0 %v1175, 106
  %v1216 = vpop.permute.xlu0 %1215
  %1217 = vrot.lane.b32.xlu0 %v1170, 106
  %v1218 = vpop.permute.xlu0 %1217
  %1219 = vrot.lane.b32.xlu0 %v1172, 106
  %v1220 = vpop.permute.xlu0 %1219
  %1221 = vrot.lane.b32.xlu0 %v1174, 106
  %v1222 = vpop.permute.xlu0 %1221
  %1223 = vrot.lane.b32.xlu0 %v1176, 106
  %v1224 = vpop.permute.xlu0 %1223
  %v1225 = vsel %vm417, %v1210, %v1218
  %v1226 = vsel %vm417, %v1212, %v1220
  %v1227 = vsel %vm417, %v1214, %v1222
  %v1228 = vsel %vm417, %v1216, %v1224
  %v1229 = vsel %vm417, %v1218, %v1210
  %v1230 = vsel %vm417, %v1220, %v1212
  %v1231 = vsel %vm417, %v1222, %v1214
  %v1232 = vsel %vm417, %v1224, %v1216
  %1233 = vrot.lane.b32.xlu0 %v1169, 104
  %v1234 = vpop.permute.xlu0 %1233
  %1235 = vrot.lane.b32.xlu0 %v1171, 104
  %v1236 = vpop.permute.xlu0 %1235
  %1237 = vrot.lane.b32.xlu0 %v1173, 104
  %v1238 = vpop.permute.xlu0 %1237
  %1239 = vrot.lane.b32.xlu0 %v1175, 104
  %v1240 = vpop.permute.xlu0 %1239
  %1241 = vrot.lane.b32.xlu0 %v1170, 104
  %v1242 = vpop.permute.xlu0 %1241
  %1243 = vrot.lane.b32.xlu0 %v1172, 104
  %v1244 = vpop.permute.xlu0 %1243
  %1245 = vrot.lane.b32.xlu0 %v1174, 104
  %v1246 = vpop.permute.xlu0 %1245
  %1247 = vrot.lane.b32.xlu0 %v1176, 104
  %v1248 = vpop.permute.xlu0 %1247
  %v1249 = vsel %vm507, %v1234, %v1242
  %v1250 = vsel %vm507, %v1236, %v1244
  %v1251 = vsel %vm507, %v1238, %v1246
  %v1252 = vsel %vm507, %v1240, %v1248
  %v1253 = vsel %vm507, %v1242, %v1234
  %v1254 = vsel %vm507, %v1244, %v1236
  %v1255 = vsel %vm507, %v1246, %v1238
  %v1256 = vsel %vm507, %v1248, %v1240
  %v1257 = vmax.f32 %v1225, %v1249
  %v1258 = vmax.f32 %v1229, %v1253
  %v1259 = vmax.f32 %v1226, %v1250
  %v1260 = vmax.f32 %v1230, %v1254
  %v1261 = vmax.f32 %v1227, %v1251
  %v1262 = vmax.f32 %v1231, %v1255
  %v1263 = vmax.f32 %v1228, %v1252
  %v1264 = vmax.f32 %v1232, %v1256
  %v1265 = vmax.f32 %v1201, %v1257
  %v1266 = vmax.f32 %v1202, %v1258
  %v1267 = vmax.f32 %v1203, %v1259
  %v1268 = vmax.f32 %v1204, %v1260
  %v1269 = vmax.f32 %v1205, %v1261
  %v1270 = vmax.f32 %v1206, %v1262
  %v1271 = vmax.f32 %v1207, %v1263
  %v1272 = vmax.f32 %v1208, %v1264
  %v1273 = vld [vmem:[%s7] sm:$0xff]
  %v1274 = vld [vmem:[%s7 + $0x8] sm:$0xff]
  %v1275 = vld [vmem:[%s7 + $0x10] sm:$0xff]
  %v1276 = vld [vmem:[%s7 + $0x18] sm:$0xff]
  %v1277 = vld [vmem:[%s7 + $0x20] sm:$0xff]
  %v1278 = vld [vmem:[%s7 + $0x28] sm:$0xff]
  %v1279 = vld [vmem:[%s7 + $0x30] sm:$0xff]
  %v1280 = vld [vmem:[%s7 + $0x38] sm:$0xff]
  %s1281 = scalar_lea.vmem %s7, 64
  %v1282 = vld [vmem:[%s1281] sm:$0xff]
  %v1283 = vld [vmem:[%s1281 + $0x8] sm:$0xff]
  %v1284 = vld [vmem:[%s1281 + $0x10] sm:$0xff]
  %v1285 = vld [vmem:[%s1281 + $0x18] sm:$0xff]
  %v1286 = vld [vmem:[%s1281 + $0x20] sm:$0xff]
  %v1287 = vld [vmem:[%s1281 + $0x28] sm:$0xff]
  %v1288 = vld [vmem:[%s1281 + $0x30] sm:$0xff]
  %v1289 = vld [vmem:[%s1281 + $0x38] sm:$0xff]
  %1290 = vrot.lane.b32.xlu0 %v1265, 126
  %v1291 = vpop.permute.xlu0 %1290
  %1292 = vrot.lane.b32.xlu0 %v1267, 126
  %v1293 = vpop.permute.xlu0 %1292
  %1294 = vrot.lane.b32.xlu0 %v1269, 126
  %v1295 = vpop.permute.xlu0 %1294
  %1296 = vrot.lane.b32.xlu0 %v1271, 126
  %v1297 = vpop.permute.xlu0 %1296
  %1298 = vrot.lane.b32.xlu0 %v1266, 126
  %v1299 = vpop.permute.xlu0 %1298
  %1300 = vrot.lane.b32.xlu0 %v1268, 126
  %v1301 = vpop.permute.xlu0 %1300
  %1302 = vrot.lane.b32.xlu0 %v1270, 126
  %v1303 = vpop.permute.xlu0 %1302
  %1304 = vrot.lane.b32.xlu0 %v1272, 126
  %v1305 = vpop.permute.xlu0 %1304
  %v1306 = vsel %vm174, %v1291, %v1299
  %v1307 = vsel %vm174, %v1293, %v1301
  %v1308 = vsel %vm174, %v1295, %v1303
  %v1309 = vsel %vm174, %v1297, %v1305
  %v1310 = vsel %vm174, %v1299, %v1291
  %v1311 = vsel %vm174, %v1301, %v1293
  %v1312 = vsel %vm174, %v1303, %v1295
  %v1313 = vsel %vm174, %v1305, %v1297
  %vm1314 = vcmask 261120
  %v1316 = vsel %vm1314, %v1282, 0
  %v1319 = vsel %vm1314, %v1283, 0
  %v1322 = vsel %vm1314, %v1284, 0
  %v1325 = vsel %vm1314, %v1285, 0
  %v1328 = vsel %vm1314, %v1286, 0
  %v1331 = vsel %vm1314, %v1287, 0
  %v1334 = vsel %vm1314, %v1288, 0
  %v1337 = vsel %vm1314, %v1289, 0
  %1339 = vmatpush.msra.mxu0 0.0
  %1340 = vmatpush.msra.mxu0 0.0
  %1341 = vmatpush.msra.mxu0 0.0
  %1342 = vmatpush.msra.mxu0 0.0
  %1343 = vmatpush.msra.mxu0 0.0
  %1344 = vmatpush.msra.mxu0 0.0
  %1345 = vmatpush.msra.mxu0 0.0
  %1346 = vmatpush.msra.mxu0 0.0
  %1347 = vmatpush.msra.mxu0 0.0
  %1348 = vmatpush.msra.mxu0 0.0
  %1349 = vmatpush.msra.mxu0 0.0
  %1350 = vmatpush.msra.mxu0 0.0
  %1351 = vmatpush.msra.mxu0 %v1309
  %1352 = vmatpush.msra.mxu0 %v1308
  %1353 = vmatpush.msra.mxu0 %v1307
  %1354 = vmatpush.msra.mxu0 %v1306
  %1355 = vmatmul.f32.gmra.mxu0 %v1316
  %v1356 = vpop.f32.mrf.mxu0
  %v1357 = vadd.f32 0.0, %v1356
  %1358 = vmatmul.f32.gmra.mxu0 %v1319
  %v1359 = vpop.f32.mrf.mxu0
  %v1360 = vadd.f32 0.0, %v1359
  %1361 = vmatmul.f32.gmra.mxu0 %v1322
  %v1362 = vpop.f32.mrf.mxu0
  %v1363 = vadd.f32 0.0, %v1362
  %1364 = vmatmul.f32.gmra.mxu0 %v1325
  %v1365 = vpop.f32.mrf.mxu0
  %v1366 = vadd.f32 0.0, %v1365
  %1367 = vmatmul.f32.gmra.mxu0 %v1328
  %v1368 = vpop.f32.mrf.mxu0
  %v1369 = vadd.f32 0.0, %v1368
  %1370 = vmatmul.f32.gmra.mxu0 %v1331
  %v1371 = vpop.f32.mrf.mxu0
  %v1372 = vadd.f32 0.0, %v1371
  %1373 = vmatmul.f32.gmra.mxu0 %v1334
  %v1374 = vpop.f32.mrf.mxu0
  %v1375 = vadd.f32 0.0, %v1374
  %1376 = vmatmul.f32.gmra.mxu0 %v1337
  %v1377 = vpop.f32.mrf.mxu0
  %v1378 = vadd.f32 0.0, %v1377
  %1379 = vdwg.mxu0
  %1380 = vmatpush.msra.mxu0 0.0
  %1381 = vmatpush.msra.mxu0 0.0
  %1382 = vmatpush.msra.mxu0 0.0
  %1383 = vmatpush.msra.mxu0 0.0
  %1384 = vmatpush.msra.mxu0 0.0
  %1385 = vmatpush.msra.mxu0 0.0
  %1386 = vmatpush.msra.mxu0 0.0
  %1387 = vmatpush.msra.mxu0 0.0
  %1388 = vmatpush.msra.mxu0 0.0
  %1389 = vmatpush.msra.mxu0 0.0
  %1390 = vmatpush.msra.mxu0 0.0
  %1391 = vmatpush.msra.mxu0 0.0
  %1392 = vmatpush.msra.mxu0 %v1313
  %1393 = vmatpush.msra.mxu0 %v1312
  %1394 = vmatpush.msra.mxu0 %v1311
  %1395 = vmatpush.msra.mxu0 %v1310
  %1396 = vmatmul.f32.gmra.mxu0 %v1316
  %v1397 = vpop.f32.mrf.mxu0
  %v1398 = vadd.f32 0.0, %v1397
  %1399 = vmatmul.f32.gmra.mxu0 %v1319
  %v1400 = vpop.f32.mrf.mxu0
  %v1401 = vadd.f32 0.0, %v1400
  %1402 = vmatmul.f32.gmra.mxu0 %v1322
  %v1403 = vpop.f32.mrf.mxu0
  %v1404 = vadd.f32 0.0, %v1403
  %1405 = vmatmul.f32.gmra.mxu0 %v1325
  %v1406 = vpop.f32.mrf.mxu0
  %v1407 = vadd.f32 0.0, %v1406
  %1408 = vmatmul.f32.gmra.mxu0 %v1328
  %v1409 = vpop.f32.mrf.mxu0
  %v1410 = vadd.f32 0.0, %v1409
  %1411 = vmatmul.f32.gmra.mxu0 %v1331
  %v1412 = vpop.f32.mrf.mxu0
  %v1413 = vadd.f32 0.0, %v1412
  %1414 = vmatmul.f32.gmra.mxu0 %v1334
  %v1415 = vpop.f32.mrf.mxu0
  %v1416 = vadd.f32 0.0, %v1415
  %1417 = vmatmul.f32.gmra.mxu0 %v1337
  %v1418 = vpop.f32.mrf.mxu0
  %v1419 = vadd.f32 0.0, %v1418
  %1420 = vdwg.mxu0
  %v1422 = vsel %vm1314, %v1273, 0
  %v1425 = vsel %vm1314, %v1274, 0
  %v1428 = vsel %vm1314, %v1275, 0
  %v1431 = vsel %vm1314, %v1276, 0
  %v1434 = vsel %vm1314, %v1277, 0
  %v1437 = vsel %vm1314, %v1278, 0
  %v1440 = vsel %vm1314, %v1279, 0
  %v1443 = vsel %vm1314, %v1280, 0
  %1445 = vmatpush.msra.mxu0 0.0
  %1446 = vmatpush.msra.mxu0 0.0
  %1447 = vmatpush.msra.mxu0 0.0
  %1448 = vmatpush.msra.mxu0 0.0
  %1449 = vmatpush.msra.mxu0 0.0
  %1450 = vmatpush.msra.mxu0 0.0
  %1451 = vmatpush.msra.mxu0 0.0
  %1452 = vmatpush.msra.mxu0 0.0
  %1453 = vmatpush.msra.mxu0 0.0
  %1454 = vmatpush.msra.mxu0 0.0
  %1455 = vmatpush.msra.mxu0 0.0
  %1456 = vmatpush.msra.mxu0 0.0
  %1457 = vmatpush.msra.mxu0 %v1271
  %1458 = vmatpush.msra.mxu0 %v1269
  %1459 = vmatpush.msra.mxu0 %v1267
  %1460 = vmatpush.msra.mxu0 %v1265
  %1461 = vmatmul.f32.gmra.mxu0 %v1422
  %v1462 = vpop.f32.mrf.mxu0
  %v1463 = vadd.f32 %v1357, %v1462
  %1464 = vmatmul.f32.gmra.mxu0 %v1425
  %v1465 = vpop.f32.mrf.mxu0
  %v1466 = vadd.f32 %v1360, %v1465
  %1467 = vmatmul.f32.gmra.mxu0 %v1428
  %v1468 = vpop.f32.mrf.mxu0
  %v1469 = vadd.f32 %v1363, %v1468
  %1470 = vmatmul.f32.gmra.mxu0 %v1431
  %v1471 = vpop.f32.mrf.mxu0
  %v1472 = vadd.f32 %v1366, %v1471
  %1473 = vmatmul.f32.gmra.mxu0 %v1434
  %v1474 = vpop.f32.mrf.mxu0
  %v1475 = vadd.f32 %v1369, %v1474
  %1476 = vmatmul.f32.gmra.mxu0 %v1437
  %v1477 = vpop.f32.mrf.mxu0
  %v1478 = vadd.f32 %v1372, %v1477
  %1479 = vmatmul.f32.gmra.mxu0 %v1440
  %v1480 = vpop.f32.mrf.mxu0
  %v1481 = vadd.f32 %v1375, %v1480
  %1482 = vmatmul.f32.gmra.mxu0 %v1443
  %v1483 = vpop.f32.mrf.mxu0
  %v1484 = vadd.f32 %v1378, %v1483
  %1485 = vdwg.mxu0
  %1486 = vmatpush.msra.mxu0 0.0
  %1487 = vmatpush.msra.mxu0 0.0
  %1488 = vmatpush.msra.mxu0 0.0
  %1489 = vmatpush.msra.mxu0 0.0
  %1490 = vmatpush.msra.mxu0 0.0
  %1491 = vmatpush.msra.mxu0 0.0
  %1492 = vmatpush.msra.mxu0 0.0
  %1493 = vmatpush.msra.mxu0 0.0
  %1494 = vmatpush.msra.mxu0 0.0
  %1495 = vmatpush.msra.mxu0 0.0
  %1496 = vmatpush.msra.mxu0 0.0
  %1497 = vmatpush.msra.mxu0 0.0
  %1498 = vmatpush.msra.mxu0 %v1272
  %1499 = vmatpush.msra.mxu0 %v1270
  %1500 = vmatpush.msra.mxu0 %v1268
  %1501 = vmatpush.msra.mxu0 %v1266
  %1502 = vmatmul.f32.gmra.mxu0 %v1422
  %v1503 = vpop.f32.mrf.mxu0
  %v1504 = vadd.f32 %v1398, %v1503
  %1505 = vmatmul.f32.gmra.mxu0 %v1425
  %v1506 = vpop.f32.mrf.mxu0
  %v1507 = vadd.f32 %v1401, %v1506
  %1508 = vmatmul.f32.gmra.mxu0 %v1428
  %v1509 = vpop.f32.mrf.mxu0
  %v1510 = vadd.f32 %v1404, %v1509
  %1511 = vmatmul.f32.gmra.mxu0 %v1431
  %v1512 = vpop.f32.mrf.mxu0
  %v1513 = vadd.f32 %v1407, %v1512
  %1514 = vmatmul.f32.gmra.mxu0 %v1434
  %v1515 = vpop.f32.mrf.mxu0
  %v1516 = vadd.f32 %v1410, %v1515
  %1517 = vmatmul.f32.gmra.mxu0 %v1437
  %v1518 = vpop.f32.mrf.mxu0
  %v1519 = vadd.f32 %v1413, %v1518
  %1520 = vmatmul.f32.gmra.mxu0 %v1440
  %v1521 = vpop.f32.mrf.mxu0
  %v1522 = vadd.f32 %v1416, %v1521
  %1523 = vmatmul.f32.gmra.mxu0 %v1443
  %v1524 = vpop.f32.mrf.mxu0
  %v1525 = vadd.f32 %v1419, %v1524
  %1526 = vdwg.mxu0
  %s1527 = scalar_lea.vmem %s7, 128
  %v1528 = vld [vmem:[%s1527] sm:$0xff]
  %v1529 = vld [vmem:[%s1527 + $0x8] sm:$0xff]
  %v1530 = vld [vmem:[%s1527 + $0x10] sm:$0xff]
  %v1531 = vld [vmem:[%s1527 + $0x18] sm:$0xff]
  %v1532 = vld [vmem:[%s1527 + $0x20] sm:$0xff]
  %v1533 = vld [vmem:[%s1527 + $0x28] sm:$0xff]
  %v1534 = vld [vmem:[%s1527 + $0x30] sm:$0xff]
  %v1535 = vld [vmem:[%s1527 + $0x38] sm:$0xff]
  %1536 = vrot.lane.b32.xlu0 %v1265, 106
  %v1537 = vpop.permute.xlu0 %1536
  %1538 = vrot.lane.b32.xlu0 %v1267, 106
  %v1539 = vpop.permute.xlu0 %1538
  %1540 = vrot.lane.b32.xlu0 %v1269, 106
  %v1541 = vpop.permute.xlu0 %1540
  %1542 = vrot.lane.b32.xlu0 %v1271, 106
  %v1543 = vpop.permute.xlu0 %1542
  %1544 = vrot.lane.b32.xlu0 %v1266, 106
  %v1545 = vpop.permute.xlu0 %1544
  %1546 = vrot.lane.b32.xlu0 %v1268, 106
  %v1547 = vpop.permute.xlu0 %1546
  %1548 = vrot.lane.b32.xlu0 %v1270, 106
  %v1549 = vpop.permute.xlu0 %1548
  %1550 = vrot.lane.b32.xlu0 %v1272, 106
  %v1551 = vpop.permute.xlu0 %1550
  %v1552 = vsel %vm417, %v1537, %v1545
  %v1553 = vsel %vm417, %v1539, %v1547
  %v1554 = vsel %vm417, %v1541, %v1549
  %v1555 = vsel %vm417, %v1543, %v1551
  %v1556 = vsel %vm417, %v1545, %v1537
  %v1557 = vsel %vm417, %v1547, %v1539
  %v1558 = vsel %vm417, %v1549, %v1541
  %v1559 = vsel %vm417, %v1551, %v1543
  %v1561 = vsel %vm1314, %v1528, 0
  %v1564 = vsel %vm1314, %v1529, 0
  %v1567 = vsel %vm1314, %v1530, 0
  %v1570 = vsel %vm1314, %v1531, 0
  %v1573 = vsel %vm1314, %v1532, 0
  %v1576 = vsel %vm1314, %v1533, 0
  %v1579 = vsel %vm1314, %v1534, 0
  %v1582 = vsel %vm1314, %v1535, 0
  %1584 = vmatpush.msra.mxu0 0.0
  %1585 = vmatpush.msra.mxu0 0.0
  %1586 = vmatpush.msra.mxu0 0.0
  %1587 = vmatpush.msra.mxu0 0.0
  %1588 = vmatpush.msra.mxu0 0.0
  %1589 = vmatpush.msra.mxu0 0.0
  %1590 = vmatpush.msra.mxu0 0.0
  %1591 = vmatpush.msra.mxu0 0.0
  %1592 = vmatpush.msra.mxu0 0.0
  %1593 = vmatpush.msra.mxu0 0.0
  %1594 = vmatpush.msra.mxu0 0.0
  %1595 = vmatpush.msra.mxu0 0.0
  %1596 = vmatpush.msra.mxu0 %v1555
  %1597 = vmatpush.msra.mxu0 %v1554
  %1598 = vmatpush.msra.mxu0 %v1553
  %1599 = vmatpush.msra.mxu0 %v1552
  %1600 = vmatmul.f32.gmra.mxu0 %v1561
  %v1601 = vpop.f32.mrf.mxu0
  %v1602 = vadd.f32 0.0, %v1601
  %1603 = vmatmul.f32.gmra.mxu0 %v1564
  %v1604 = vpop.f32.mrf.mxu0
  %v1605 = vadd.f32 0.0, %v1604
  %1606 = vmatmul.f32.gmra.mxu0 %v1567
  %v1607 = vpop.f32.mrf.mxu0
  %v1608 = vadd.f32 0.0, %v1607
  %1609 = vmatmul.f32.gmra.mxu0 %v1570
  %v1610 = vpop.f32.mrf.mxu0
  %v1611 = vadd.f32 0.0, %v1610
  %1612 = vmatmul.f32.gmra.mxu0 %v1573
  %v1613 = vpop.f32.mrf.mxu0
  %v1614 = vadd.f32 0.0, %v1613
  %1615 = vmatmul.f32.gmra.mxu0 %v1576
  %v1616 = vpop.f32.mrf.mxu0
  %v1617 = vadd.f32 0.0, %v1616
  %1618 = vmatmul.f32.gmra.mxu0 %v1579
  %v1619 = vpop.f32.mrf.mxu0
  %v1620 = vadd.f32 0.0, %v1619
  %1621 = vmatmul.f32.gmra.mxu0 %v1582
  %v1622 = vpop.f32.mrf.mxu0
  %v1623 = vadd.f32 0.0, %v1622
  %1624 = vdwg.mxu0
  %1625 = vmatpush.msra.mxu0 0.0
  %1626 = vmatpush.msra.mxu0 0.0
  %1627 = vmatpush.msra.mxu0 0.0
  %1628 = vmatpush.msra.mxu0 0.0
  %1629 = vmatpush.msra.mxu0 0.0
  %1630 = vmatpush.msra.mxu0 0.0
  %1631 = vmatpush.msra.mxu0 0.0
  %1632 = vmatpush.msra.mxu0 0.0
  %1633 = vmatpush.msra.mxu0 0.0
  %1634 = vmatpush.msra.mxu0 0.0
  %1635 = vmatpush.msra.mxu0 0.0
  %1636 = vmatpush.msra.mxu0 0.0
  %1637 = vmatpush.msra.mxu0 %v1559
  %1638 = vmatpush.msra.mxu0 %v1558
  %1639 = vmatpush.msra.mxu0 %v1557
  %1640 = vmatpush.msra.mxu0 %v1556
  %1641 = vmatmul.f32.gmra.mxu0 %v1561
  %v1642 = vpop.f32.mrf.mxu0
  %v1643 = vadd.f32 0.0, %v1642
  %1644 = vmatmul.f32.gmra.mxu0 %v1564
  %v1645 = vpop.f32.mrf.mxu0
  %v1646 = vadd.f32 0.0, %v1645
  %1647 = vmatmul.f32.gmra.mxu0 %v1567
  %v1648 = vpop.f32.mrf.mxu0
  %v1649 = vadd.f32 0.0, %v1648
  %1650 = vmatmul.f32.gmra.mxu0 %v1570
  %v1651 = vpop.f32.mrf.mxu0
  %v1652 = vadd.f32 0.0, %v1651
  %1653 = vmatmul.f32.gmra.mxu0 %v1573
  %v1654 = vpop.f32.mrf.mxu0
  %v1655 = vadd.f32 0.0, %v1654
  %1656 = vmatmul.f32.gmra.mxu0 %v1576
  %v1657 = vpop.f32.mrf.mxu0
  %v1658 = vadd.f32 0.0, %v1657
  %1659 = vmatmul.f32.gmra.mxu0 %v1579
  %v1660 = vpop.f32.mrf.mxu0
  %v1661 = vadd.f32 0.0, %v1660
  %1662 = vmatmul.f32.gmra.mxu0 %v1582
  %v1663 = vpop.f32.mrf.mxu0
  %v1664 = vadd.f32 0.0, %v1663
  %1665 = vdwg.mxu0
  %v1666 = vadd.f32 %v1463, %v1602
  %v1667 = vadd.f32 %v1504, %v1643
  %v1668 = vadd.f32 %v1466, %v1605
  %v1669 = vadd.f32 %v1507, %v1646
  %v1670 = vadd.f32 %v1469, %v1608
  %v1671 = vadd.f32 %v1510, %v1649
  %v1672 = vadd.f32 %v1472, %v1611
  %v1673 = vadd.f32 %v1513, %v1652
  %v1674 = vadd.f32 %v1475, %v1614
  %v1675 = vadd.f32 %v1516, %v1655
  %v1676 = vadd.f32 %v1478, %v1617
  %v1677 = vadd.f32 %v1519, %v1658
  %v1678 = vadd.f32 %v1481, %v1620
  %v1679 = vadd.f32 %v1522, %v1661
  %v1680 = vadd.f32 %v1484, %v1623
  %v1681 = vadd.f32 %v1525, %v1664
  %s1682 = scalar_lea.vmem %s7, 192
  %v1683 = vld [vmem:[%s1682] sm:$0xff]
  %v1684 = vld [vmem:[%s1682 + $0x8] sm:$0xff]
  %v1685 = vld [vmem:[%s1682 + $0x10] sm:$0xff]
  %v1686 = vld [vmem:[%s1682 + $0x18] sm:$0xff]
  %v1687 = vld [vmem:[%s1682 + $0x20] sm:$0xff]
  %v1688 = vld [vmem:[%s1682 + $0x28] sm:$0xff]
  %v1689 = vld [vmem:[%s1682 + $0x30] sm:$0xff]
  %v1690 = vld [vmem:[%s1682 + $0x38] sm:$0xff]
  %1691 = vrot.lane.b32.xlu0 %v1265, 104
  %v1692 = vpop.permute.xlu0 %1691
  %1693 = vrot.lane.b32.xlu0 %v1267, 104
  %v1694 = vpop.permute.xlu0 %1693
  %1695 = vrot.lane.b32.xlu0 %v1269, 104
  %v1696 = vpop.permute.xlu0 %1695
  %1697 = vrot.lane.b32.xlu0 %v1271, 104
  %v1698 = vpop.permute.xlu0 %1697
  %1699 = vrot.lane.b32.xlu0 %v1266, 104
  %v1700 = vpop.permute.xlu0 %1699
  %1701 = vrot.lane.b32.xlu0 %v1268, 104
  %v1702 = vpop.permute.xlu0 %1701
  %1703 = vrot.lane.b32.xlu0 %v1270, 104
  %v1704 = vpop.permute.xlu0 %1703
  %1705 = vrot.lane.b32.xlu0 %v1272, 104
  %v1706 = vpop.permute.xlu0 %1705
  %v1707 = vsel %vm507, %v1692, %v1700
  %v1708 = vsel %vm507, %v1694, %v1702
  %v1709 = vsel %vm507, %v1696, %v1704
  %v1710 = vsel %vm507, %v1698, %v1706
  %v1711 = vsel %vm507, %v1700, %v1692
  %v1712 = vsel %vm507, %v1702, %v1694
  %v1713 = vsel %vm507, %v1704, %v1696
  %v1714 = vsel %vm507, %v1706, %v1698
  %v1716 = vsel %vm1314, %v1683, 0
  %v1719 = vsel %vm1314, %v1684, 0
  %v1722 = vsel %vm1314, %v1685, 0
  %v1725 = vsel %vm1314, %v1686, 0
  %v1728 = vsel %vm1314, %v1687, 0
  %v1731 = vsel %vm1314, %v1688, 0
  %v1734 = vsel %vm1314, %v1689, 0
  %v1737 = vsel %vm1314, %v1690, 0
  %1739 = vmatpush.msra.mxu0 0.0
  %1740 = vmatpush.msra.mxu0 0.0
  %1741 = vmatpush.msra.mxu0 0.0
  %1742 = vmatpush.msra.mxu0 0.0
  %1743 = vmatpush.msra.mxu0 0.0
  %1744 = vmatpush.msra.mxu0 0.0
  %1745 = vmatpush.msra.mxu0 0.0
  %1746 = vmatpush.msra.mxu0 0.0
  %1747 = vmatpush.msra.mxu0 0.0
  %1748 = vmatpush.msra.mxu0 0.0
  %1749 = vmatpush.msra.mxu0 0.0
  %1750 = vmatpush.msra.mxu0 0.0
  %1751 = vmatpush.msra.mxu0 %v1710
  %1752 = vmatpush.msra.mxu0 %v1709
  %1753 = vmatpush.msra.mxu0 %v1708
  %1754 = vmatpush.msra.mxu0 %v1707
  %1755 = vmatmul.f32.gmra.mxu0 %v1716
  %v1756 = vpop.f32.mrf.mxu0
  %v1757 = vadd.f32 0.0, %v1756
  %1758 = vmatmul.f32.gmra.mxu0 %v1719
  %v1759 = vpop.f32.mrf.mxu0
  %v1760 = vadd.f32 0.0, %v1759
  %1761 = vmatmul.f32.gmra.mxu0 %v1722
  %v1762 = vpop.f32.mrf.mxu0
  %v1763 = vadd.f32 0.0, %v1762
  %1764 = vmatmul.f32.gmra.mxu0 %v1725
  %v1765 = vpop.f32.mrf.mxu0
  %v1766 = vadd.f32 0.0, %v1765
  %1767 = vmatmul.f32.gmra.mxu0 %v1728
  %v1768 = vpop.f32.mrf.mxu0
  %v1769 = vadd.f32 0.0, %v1768
  %1770 = vmatmul.f32.gmra.mxu0 %v1731
  %v1771 = vpop.f32.mrf.mxu0
  %v1772 = vadd.f32 0.0, %v1771
  %1773 = vmatmul.f32.gmra.mxu0 %v1734
  %v1774 = vpop.f32.mrf.mxu0
  %v1775 = vadd.f32 0.0, %v1774
  %1776 = vmatmul.f32.gmra.mxu0 %v1737
  %v1777 = vpop.f32.mrf.mxu0
  %v1778 = vadd.f32 0.0, %v1777
  %1779 = vdwg.mxu0
  %1780 = vmatpush.msra.mxu0 0.0
  %1781 = vmatpush.msra.mxu0 0.0
  %1782 = vmatpush.msra.mxu0 0.0
  %1783 = vmatpush.msra.mxu0 0.0
  %1784 = vmatpush.msra.mxu0 0.0
  %1785 = vmatpush.msra.mxu0 0.0
  %1786 = vmatpush.msra.mxu0 0.0
  %1787 = vmatpush.msra.mxu0 0.0
  %1788 = vmatpush.msra.mxu0 0.0
  %1789 = vmatpush.msra.mxu0 0.0
  %1790 = vmatpush.msra.mxu0 0.0
  %1791 = vmatpush.msra.mxu0 0.0
  %1792 = vmatpush.msra.mxu0 %v1714
  %1793 = vmatpush.msra.mxu0 %v1713
  %1794 = vmatpush.msra.mxu0 %v1712
  %1795 = vmatpush.msra.mxu0 %v1711
  %1796 = vmatmul.f32.gmra.mxu0 %v1716
  %v1797 = vpop.f32.mrf.mxu0
  %v1798 = vadd.f32 0.0, %v1797
  %1799 = vmatmul.f32.gmra.mxu0 %v1719
  %v1800 = vpop.f32.mrf.mxu0
  %v1801 = vadd.f32 0.0, %v1800
  %1802 = vmatmul.f32.gmra.mxu0 %v1722
  %v1803 = vpop.f32.mrf.mxu0
  %v1804 = vadd.f32 0.0, %v1803
  %1805 = vmatmul.f32.gmra.mxu0 %v1725
  %v1806 = vpop.f32.mrf.mxu0
  %v1807 = vadd.f32 0.0, %v1806
  %1808 = vmatmul.f32.gmra.mxu0 %v1728
  %v1809 = vpop.f32.mrf.mxu0
  %v1810 = vadd.f32 0.0, %v1809
  %1811 = vmatmul.f32.gmra.mxu0 %v1731
  %v1812 = vpop.f32.mrf.mxu0
  %v1813 = vadd.f32 0.0, %v1812
  %1814 = vmatmul.f32.gmra.mxu0 %v1734
  %v1815 = vpop.f32.mrf.mxu0
  %v1816 = vadd.f32 0.0, %v1815
  %1817 = vmatmul.f32.gmra.mxu0 %v1737
  %v1818 = vpop.f32.mrf.mxu0
  %v1819 = vadd.f32 0.0, %v1818
  %1820 = vdwg.mxu0
  %v1821 = vadd.f32 %v1666, %v1757
  %v1822 = vadd.f32 %v1667, %v1798
  %v1823 = vadd.f32 %v1668, %v1760
  %v1824 = vadd.f32 %v1669, %v1801
  %v1825 = vadd.f32 %v1670, %v1763
  %v1826 = vadd.f32 %v1671, %v1804
  %v1827 = vadd.f32 %v1672, %v1766
  %v1828 = vadd.f32 %v1673, %v1807
  %v1829 = vadd.f32 %v1674, %v1769
  %v1830 = vadd.f32 %v1675, %v1810
  %v1831 = vadd.f32 %v1676, %v1772
  %v1832 = vadd.f32 %v1677, %v1813
  %v1833 = vadd.f32 %v1678, %v1775
  %v1834 = vadd.f32 %v1679, %v1816
  %v1835 = vadd.f32 %v1680, %v1778
  %v1836 = vadd.f32 %v1681, %v1819
  %v1837 = vlaneseq
  %v1838 = vshrl.u32 %v1837, 7
  %v1839 = vadd.s32 %v1838, 8
  %v1840 = vadd.s32 %v1838, 16
  %v1841 = vadd.s32 %v1838, 24
  %v1842 = vadd.s32 %v1838, 32
  %v1843 = vadd.s32 %v1838, 40
  %v1844 = vadd.s32 %v1838, 48
  %v1845 = vadd.s32 %v1838, 56
  %v1846 = vadd.s32 %v1838, 64
  %v1847 = vadd.s32 %v1838, 72
  %v1848 = vadd.s32 %v1838, 80
  %v1849 = vadd.s32 %v1838, 88
  %v1850 = vadd.s32 %v1838, 96
  %v1851 = vadd.s32 %v1838, 104
  %v1852 = vadd.s32 %v1838, 112
  %v1853 = vadd.s32 %v1838, 120
  %v1854 = vadd.s32 %v1838, 128
  %v1855 = vadd.s32 %v1838, 136
  %v1856 = vadd.s32 %v1838, 144
  %v1857 = vadd.s32 %v1838, 152
  %v1858 = vadd.s32 %v1838, 160
  %v1859 = vadd.s32 %v1838, 168
  %v1860 = vadd.s32 %v1838, 176
  %v1861 = vadd.s32 %v1838, 184
  %v1862 = vadd.s32 %v1838, 192
  %v1863 = vadd.s32 %v1838, 200
  %v1864 = vadd.s32 %v1838, 208
  %v1865 = vadd.s32 %v1838, 216
  %v1866 = vadd.s32 %v1838, 224
  %v1867 = vadd.s32 %v1838, 232
  %v1868 = vadd.s32 %v1838, 240
  %v1869 = vadd.s32 %v1838, 248
  %v1870 = vmul.u32 %v137, 128
  %vm1871 = vcmp.eq.s32.totalorder %v1838, %v1870
  %vm1872 = vcmp.eq.s32.totalorder %v1839, %v1870
  %vm1873 = vcmp.eq.s32.totalorder %v1840, %v1870
  %vm1874 = vcmp.eq.s32.totalorder %v1841, %v1870
  %vm1875 = vcmp.eq.s32.totalorder %v1842, %v1870
  %vm1876 = vcmp.eq.s32.totalorder %v1843, %v1870
  %vm1877 = vcmp.eq.s32.totalorder %v1844, %v1870
  %vm1878 = vcmp.eq.s32.totalorder %v1845, %v1870
  %vm1879 = vcmp.eq.s32.totalorder %v1846, %v1870
  %vm1880 = vcmp.eq.s32.totalorder %v1847, %v1870
  %vm1881 = vcmp.eq.s32.totalorder %v1848, %v1870
  %vm1882 = vcmp.eq.s32.totalorder %v1849, %v1870
  %vm1883 = vcmp.eq.s32.totalorder %v1850, %v1870
  %vm1884 = vcmp.eq.s32.totalorder %v1851, %v1870
  %vm1885 = vcmp.eq.s32.totalorder %v1852, %v1870
  %vm1886 = vcmp.eq.s32.totalorder %v1853, %v1870
  %vm1887 = vcmp.eq.s32.totalorder %v1854, %v1870
  %vm1888 = vcmp.eq.s32.totalorder %v1855, %v1870
  %vm1889 = vcmp.eq.s32.totalorder %v1856, %v1870
  %vm1890 = vcmp.eq.s32.totalorder %v1857, %v1870
  %vm1891 = vcmp.eq.s32.totalorder %v1858, %v1870
  %vm1892 = vcmp.eq.s32.totalorder %v1859, %v1870
  %vm1893 = vcmp.eq.s32.totalorder %v1860, %v1870
  %vm1894 = vcmp.eq.s32.totalorder %v1861, %v1870
  %vm1895 = vcmp.eq.s32.totalorder %v1862, %v1870
  %vm1896 = vcmp.eq.s32.totalorder %v1863, %v1870
  %vm1897 = vcmp.eq.s32.totalorder %v1864, %v1870
  %vm1898 = vcmp.eq.s32.totalorder %v1865, %v1870
  %vm1899 = vcmp.eq.s32.totalorder %v1866, %v1870
  %vm1900 = vcmp.eq.s32.totalorder %v1867, %v1870
  %vm1901 = vcmp.eq.s32.totalorder %v1868, %v1870
  %vm1902 = vcmp.eq.s32.totalorder %v1869, %v1870
  %v1903 = vsel %vm1871, 1, 0
  %v1904 = vsel %vm1872, 1, 0
  %v1905 = vsel %vm1873, 1, 0
  %v1906 = vsel %vm1874, 1, 0
  %v1907 = vsel %vm1875, 1, 0
  %v1908 = vsel %vm1876, 1, 0
  %v1909 = vsel %vm1877, 1, 0
  %v1910 = vsel %vm1878, 1, 0
  %v1911 = vsel %vm1879, 1, 0
  %v1912 = vsel %vm1880, 1, 0
  %v1913 = vsel %vm1881, 1, 0
  %v1914 = vsel %vm1882, 1, 0
  %v1915 = vsel %vm1883, 1, 0
  %v1916 = vsel %vm1884, 1, 0
  %v1917 = vsel %vm1885, 1, 0
  %v1918 = vsel %vm1886, 1, 0
  %v1919 = vsel %vm1887, 1, 0
  %v1920 = vsel %vm1888, 1, 0
  %v1921 = vsel %vm1889, 1, 0
  %v1922 = vsel %vm1890, 1, 0
  %v1923 = vsel %vm1891, 1, 0
  %v1924 = vsel %vm1892, 1, 0
  %v1925 = vsel %vm1893, 1, 0
  %v1926 = vsel %vm1894, 1, 0
  %v1927 = vsel %vm1895, 1, 0
  %v1928 = vsel %vm1896, 1, 0
  %v1929 = vsel %vm1897, 1, 0
  %v1930 = vsel %vm1898, 1, 0
  %v1931 = vsel %vm1899, 1, 0
  %v1932 = vsel %vm1900, 1, 0
  %v1933 = vsel %vm1901, 1, 0
  %v1934 = vsel %vm1902, 1, 0
  %v1935 = vcvt.s32.f32 %v1903
  %v1936 = vcvt.s32.f32 %v1904
  %v1937 = vcvt.s32.f32 %v1905
  %v1938 = vcvt.s32.f32 %v1906
  %v1939 = vcvt.s32.f32 %v1907
  %v1940 = vcvt.s32.f32 %v1908
  %v1941 = vcvt.s32.f32 %v1909
  %v1942 = vcvt.s32.f32 %v1910
  %v1943 = vcvt.s32.f32 %v1911
  %v1944 = vcvt.s32.f32 %v1912
  %v1945 = vcvt.s32.f32 %v1913
  %v1946 = vcvt.s32.f32 %v1914
  %v1947 = vcvt.s32.f32 %v1915
  %v1948 = vcvt.s32.f32 %v1916
  %v1949 = vcvt.s32.f32 %v1917
  %v1950 = vcvt.s32.f32 %v1918
  %v1951 = vcvt.s32.f32 %v1919
  %v1952 = vcvt.s32.f32 %v1920
  %v1953 = vcvt.s32.f32 %v1921
  %v1954 = vcvt.s32.f32 %v1922
  %v1955 = vcvt.s32.f32 %v1923
  %v1956 = vcvt.s32.f32 %v1924
  %v1957 = vcvt.s32.f32 %v1925
  %v1958 = vcvt.s32.f32 %v1926
  %v1959 = vcvt.s32.f32 %v1927
  %v1960 = vcvt.s32.f32 %v1928
  %v1961 = vcvt.s32.f32 %v1929
  %v1962 = vcvt.s32.f32 %v1930
  %v1963 = vcvt.s32.f32 %v1931
  %v1964 = vcvt.s32.f32 %v1932
  %v1965 = vcvt.s32.f32 %v1933
  %v1966 = vcvt.s32.f32 %v1934
  %v1967 = vld [vmem:[%s8] sm:$0xff]
  %v1968 = vld [vmem:[%s8 + $0x8] sm:$0xff]
  %v1969 = vld [vmem:[%s8 + $0x10] sm:$0xff]
  %v1970 = vld [vmem:[%s8 + $0x18] sm:$0xff]
  %v1971 = vld [vmem:[%s8 + $0x20] sm:$0xff]
  %v1972 = vld [vmem:[%s8 + $0x28] sm:$0xff]
  %v1973 = vld [vmem:[%s8 + $0x30] sm:$0xff]
  %v1974 = vld [vmem:[%s8 + $0x38] sm:$0xff]
  %1976 = vset.pattern.permute.xlu0 0
  %1977 = vperm.xlu0 %1976, %v1967
  %v1978 = vpop.permute.xlu0 %1977
  %1981 = vset.pattern.permute.xlu0 0
  %1982 = vperm.xlu0 %1981, %v1968
  %v1983 = vpop.permute.xlu0 %1982
  %1986 = vset.pattern.permute.xlu0 0
  %1987 = vperm.xlu0 %1986, %v1969
  %v1988 = vpop.permute.xlu0 %1987
  %1991 = vset.pattern.permute.xlu0 0
  %1992 = vperm.xlu0 %1991, %v1970
  %v1993 = vpop.permute.xlu0 %1992
  %1996 = vset.pattern.permute.xlu0 0
  %1997 = vperm.xlu0 %1996, %v1971
  %v1998 = vpop.permute.xlu0 %1997
  %2001 = vset.pattern.permute.xlu0 0
  %2002 = vperm.xlu0 %2001, %v1972
  %v2003 = vpop.permute.xlu0 %2002
  %2006 = vset.pattern.permute.xlu0 0
  %2007 = vperm.xlu0 %2006, %v1973
  %v2008 = vpop.permute.xlu0 %2007
  %2011 = vset.pattern.permute.xlu0 0
  %2012 = vperm.xlu0 %2011, %v1974
  %v2013 = vpop.permute.xlu0 %2012
  %2015 = vmatpush.msra.mxu0 %v1950
  %2016 = vmatpush.msra.mxu0 %v1949
  %2017 = vmatpush.msra.mxu0 %v1948
  %2018 = vmatpush.msra.mxu0 %v1947
  %2019 = vmatpush.msra.mxu0 %v1946
  %2020 = vmatpush.msra.mxu0 %v1945
  %2021 = vmatpush.msra.mxu0 %v1944
  %2022 = vmatpush.msra.mxu0 %v1943
  %2023 = vmatpush.msra.mxu0 %v1942
  %2024 = vmatpush.msra.mxu0 %v1941
  %2025 = vmatpush.msra.mxu0 %v1940
  %2026 = vmatpush.msra.mxu0 %v1939
  %2027 = vmatpush.msra.mxu0 %v1938
  %2028 = vmatpush.msra.mxu0 %v1937
  %2029 = vmatpush.msra.mxu0 %v1936
  %2030 = vmatpush.msra.mxu0 %v1935
  %2031 = vmatmul.f32.gmra.mxu0 %v1821
  %v2032 = vpop.f32.mrf.mxu0
  %v2033 = vadd.f32 %v1978, %v2032
  %2034 = vmatmul.f32.gmra.mxu0 %v1823
  %v2035 = vpop.f32.mrf.mxu0
  %v2036 = vadd.f32 %v1983, %v2035
  %2037 = vmatmul.f32.gmra.mxu0 %v1825
  %v2038 = vpop.f32.mrf.mxu0
  %v2039 = vadd.f32 %v1988, %v2038
  %2040 = vmatmul.f32.gmra.mxu0 %v1827
  %v2041 = vpop.f32.mrf.mxu0
  %v2042 = vadd.f32 %v1993, %v2041
  %2043 = vmatmul.f32.gmra.mxu0 %v1829
  %v2044 = vpop.f32.mrf.mxu0
  %v2045 = vadd.f32 %v1998, %v2044
  %2046 = vmatmul.f32.gmra.mxu0 %v1831
  %v2047 = vpop.f32.mrf.mxu0
  %v2048 = vadd.f32 %v2003, %v2047
  %2049 = vmatmul.f32.gmra.mxu0 %v1833
  %v2050 = vpop.f32.mrf.mxu0
  %v2051 = vadd.f32 %v2008, %v2050
  %2052 = vmatmul.f32.gmra.mxu0 %v1835
  %v2053 = vpop.f32.mrf.mxu0
  %v2054 = vadd.f32 %v2013, %v2053
  %2055 = vdwg.mxu0
  %2056 = vmatpush.msra.mxu0 %v1966
  %2057 = vmatpush.msra.mxu0 %v1965
  %2058 = vmatpush.msra.mxu0 %v1964
  %2059 = vmatpush.msra.mxu0 %v1963
  %2060 = vmatpush.msra.mxu0 %v1962
  %2061 = vmatpush.msra.mxu0 %v1961
  %2062 = vmatpush.msra.mxu0 %v1960
  %2063 = vmatpush.msra.mxu0 %v1959
  %2064 = vmatpush.msra.mxu0 %v1958
  %2065 = vmatpush.msra.mxu0 %v1957
  %2066 = vmatpush.msra.mxu0 %v1956
  %2067 = vmatpush.msra.mxu0 %v1955
  %2068 = vmatpush.msra.mxu0 %v1954
  %2069 = vmatpush.msra.mxu0 %v1953
  %2070 = vmatpush.msra.mxu0 %v1952
  %2071 = vmatpush.msra.mxu0 %v1951
  %2072 = vmatmul.f32.gmra.mxu0 %v1822
  %v2073 = vpop.f32.mrf.mxu0
  %v2074 = vadd.f32 %v2033, %v2073
  %2075 = vmatmul.f32.gmra.mxu0 %v1824
  %v2076 = vpop.f32.mrf.mxu0
  %v2077 = vadd.f32 %v2036, %v2076
  %2078 = vmatmul.f32.gmra.mxu0 %v1826
  %v2079 = vpop.f32.mrf.mxu0
  %v2080 = vadd.f32 %v2039, %v2079
  %2081 = vmatmul.f32.gmra.mxu0 %v1828
  %v2082 = vpop.f32.mrf.mxu0
  %v2083 = vadd.f32 %v2042, %v2082
  %2084 = vmatmul.f32.gmra.mxu0 %v1830
  %v2085 = vpop.f32.mrf.mxu0
  %v2086 = vadd.f32 %v2045, %v2085
  %2087 = vmatmul.f32.gmra.mxu0 %v1832
  %v2088 = vpop.f32.mrf.mxu0
  %v2089 = vadd.f32 %v2048, %v2088
  %2090 = vmatmul.f32.gmra.mxu0 %v1834
  %v2091 = vpop.f32.mrf.mxu0
  %v2092 = vadd.f32 %v2051, %v2091
  %2093 = vmatmul.f32.gmra.mxu0 %v1836
  %v2094 = vpop.f32.mrf.mxu0
  %v2095 = vadd.f32 %v2054, %v2094
  %2096 = vdwg.mxu0
  %v2097 = vmax.f32 %v2074, 0.0
  %v2098 = vmax.f32 %v2077, 0.0
  %v2099 = vmax.f32 %v2080, 0.0
  %v2100 = vmax.f32 %v2083, 0.0
  %v2101 = vmax.f32 %v2086, 0.0
  %v2102 = vmax.f32 %v2089, 0.0
  %v2103 = vmax.f32 %v2092, 0.0
  %v2104 = vmax.f32 %v2095, 0.0
  %v2105 = vld [vmem:[%s9] sm:$0xf]
  %v2106 = vld [vmem:[%s10] sm:$0xf]
  %2108 = vset.pattern.permute.xlu0 0
  %2109 = vperm.xlu0 %2108, %v2106
  %v2110 = vpop.permute.xlu0 %2109
  %vm2112 = vcmask 523264
  %v2114 = vsel %vm2112, %v2105, 0
  %2116 = vmatpush.msra.mxu0 0.0
  %2117 = vmatpush.msra.mxu0 0.0
  %2118 = vmatpush.msra.mxu0 0.0
  %2119 = vmatpush.msra.mxu0 0.0
  %2120 = vmatpush.msra.mxu0 0.0
  %2121 = vmatpush.msra.mxu0 0.0
  %2122 = vmatpush.msra.mxu0 0.0
  %2123 = vmatpush.msra.mxu0 0.0
  %2124 = vmatpush.msra.mxu0 %v2104
  %2125 = vmatpush.msra.mxu0 %v2103
  %2126 = vmatpush.msra.mxu0 %v2102
  %2127 = vmatpush.msra.mxu0 %v2101
  %2128 = vmatpush.msra.mxu0 %v2100
  %2129 = vmatpush.msra.mxu0 %v2099
  %2130 = vmatpush.msra.mxu0 %v2098
  %2131 = vmatpush.msra.mxu0 %v2097
  %2132 = vmatmul.f32.gmra.mxu0 %v2114
  %v2133 = vpop.f32.mrf.mxu0
  %v2134 = vadd.f32 %v2110, %v2133
  %2135 = vdwg.mxu0
  %vm2136 = vcmask 11264
  %v2137 = vsel %vm2136, %v2134, -inf
  %v2138 = vrot.slane %v2137, 4
  %v2139 = vmax.f32 %v2137, %v2138
  %v2140 = vrot.slane %v2139, 2
  %v2141 = vmax.f32 %v2139, %v2140
  %v2142 = vrot.slane %v2141, 1
  %v2143 = vmax.f32 %v2141, %v2142
  %v2144 = vsub.f32 %v2134, %v2143
  %v2145 = vmul.f32 %v2144, 1.442695
  %v2146 = vpow.pop %v2145
  %v2147 = vsel %vm2136, %v2146, 0.0
  %v2148 = vrot.slane %v2147, 4
  %v2149 = vadd.f32 %v2147, %v2148
  %v2150 = vrot.slane %v2149, 2
  %v2151 = vadd.f32 %v2149, %v2150
  %v2152 = vrot.slane %v2151, 1
  %v2153 = vadd.f32 %v2151, %v2152
  %v2154 = vrcp.pop %v2153
  %v2155 = vmul.f32 %v2146, %v2154
  %2156 = vst.msk [vmem:[%s11] sm:$0xf] %vm2136, %v2155
  // Predicated region
  $region46: #{cnn_actor_forward.1} parent=0 // pred_check
    _
  $region47: #{cnn_actor_forward.1} parent=0 // pred_check_branch
    %2158 = sbr.rel (0) target = $region49
  $region48: #{cnn_actor_forward.1} parent=0 // pred_region
    _
  $region49: #{cnn_actor_forward.1} parent=0 // pred_fallthru
    _
  // Predicated region
  $region50: #{cnn_actor_forward.1} parent=0 // pred_check
    _
  $region51: #{cnn_actor_forward.1} parent=0 // pred_check_branch
    %2160 = sbr.rel (0) target = $region53
  $region52: #{cnn_actor_forward.1} parent=0 // pred_region
    _
  $region53: #{cnn_actor_forward.1} parent=0 // pred_fallthru
    _

</llo_original>
